<compile_context>
chip_gen: v7x
topology: tpu7x:2x2x1
jax: 0.10.0
libtpu: 0.0.40
codegen_flags: <defaults>
</compile_context>

<pallas_src>
import jax
import jax.numpy as jnp
from jax.experimental import pallas as pl
from jax.experimental.pallas import tpu as pltpu


def _discriminator_kernel(x_ref, w1_ref, b1_ref, w2_ref, b2_ref, w3_ref,
                          b3_ref, o_ref):
    """One batch tile: x_ref (TB, F) f32  ->  o_ref (TB, 1) f32."""
    # Cast the activation tile to bf16 on the VPU; matmuls run bf16 on the MXU
    # with f32 accumulation.
    x = x_ref[...].astype(jnp.bfloat16)
    # ---- linear1 + relu ----
    h = jnp.dot(x, w1_ref[...], preferred_element_type=jnp.float32)
    h = jnp.maximum(h + b1_ref[...], 0.0)
    # ---- linear2 + relu ----
    h = jnp.dot(h.astype(jnp.bfloat16), w2_ref[...],
                preferred_element_type=jnp.float32)
    h = jnp.maximum(h + b2_ref[...], 0.0)
    # ---- linear3 + sigmoid ----
    # Plain (TB,256)@(256,1) orientation -> no XLU transpose of h; the (TB,1)
    # masked column store is negligible.
    z = jnp.dot(h.astype(jnp.bfloat16), w3_ref[...],
                preferred_element_type=jnp.float32)
    o_ref[...] = jax.nn.sigmoid(z + b3_ref[0])


def _choose_batch_tile(batch, max_tile=1024):
    """MXU/lane-friendly batch tile; keeps >=2 grid steps when possible."""
    b_pad = -(-batch // 256) * 256            # round up to a multiple of 256
    if b_pad <= max_tile:
        # >=2 tiles (when we have >=512 rows) so the "parallel" batch axis can
        # split across v7x's two TensorCores and the x DMA double-buffers.
        return b_pad // 2 if b_pad >= 512 else b_pad
    return max_tile


def _resident_spec(shape, single_buffer):
    """BlockSpec for a weight/bias that stays VMEM-resident across the grid."""
    index_map = lambda i: (0, 0)
    if single_buffer:
        # Pallas double-buffers inputs even when the block index never
        # changes; single-buffer big resident weights (matters on v7x: 64 MiB
        # physical / 32 MiB scoped VMEM).
        return pl.BlockSpec(shape, index_map, pipeline_mode=pl.Buffered(1))
    return pl.BlockSpec(shape, index_map)


def discriminator_forward(x, params, *, max_batch_tile=1024):
    """x: (B, img_size**2) float32. params: dict (weights stored (in, out)).

    Returns (B, 1) float32, matching the PyTorch Discriminator forward.
    """
    w1, b1 = params["w1"], params["b1"]
    w2, b2 = params["w2"], params["b2"]
    w3, b3 = params["w3"], params["b3"]

    B, F = x.shape
    TB = _choose_batch_tile(B, max_batch_tile)
    n_tiles = -(-B // TB)                     # cdiv
    B_pad = n_tiles * TB

    # x stays f32 (no wrapper-side bf16 materialization); only a ragged last
    # tile is zero-padded.  The bf16 cast happens inside the kernel.
    x_p = x if B_pad == B else jnp.pad(x, ((0, B_pad - B), (0, 0)))

    w1b = w1.astype(jnp.bfloat16)             # (F, 512)
    w2b = w2.astype(jnp.bfloat16)             # (512, 256)
    w3b = w3.astype(jnp.bfloat16)             # (256, 1)
    b3s = b3.reshape(-1).astype(jnp.float32)  # (1,) scalar -> SMEM

    resident_bytes = ((w1b.size + w2b.size + w3b.size) * 2
                      + (b1.size + b2.size) * 4)
    single_buffer_weights = resident_bytes > (8 << 20)
    weight_factor = 1 if single_buffer_weights else 2

    # VMEM budget: double-buffered f32 x tile + resident weights + f32
    # intermediates + double-buffered out tile, with headroom.
    vmem_est = (2 * TB * F * 4
                + weight_factor * resident_bytes
                + 2 * TB * 4
                + TB * (512 + 512 + 256) * 4)
    vmem_limit = min(64 << 20, max(32 << 20, (vmem_est * 3) // 2))
    # TODO(synk): for very large F (>~8K) on v7x, add a trailing "arbitrary" K
    # grid axis with an f32 accumulator scratch for layer 1 instead of keeping
    # the whole (F,512) weight and (TB,F) x tile resident.

    flops = 2 * B_pad * (F * 512 + 512 * 256 + 256 * 1)
    bytes_accessed = (x_p.size * 4 + w1b.size * 2 + w2b.size * 2 + w3b.size * 2
                      + b1.size * 4 + b2.size * 4 + b3s.size * 4 + B_pad * 4)

    grid_spec = pltpu.PrefetchScalarGridSpec(
        num_scalar_prefetch=0,
        grid=(n_tiles,),
        in_specs=[
            pl.BlockSpec((TB, F), lambda i: (i, 0)),   # x tile (pipelined)
            _resident_spec((F, 512), single_buffer_weights),
            _resident_spec((1, 512), single_buffer_weights),
            _resident_spec((512, 256), single_buffer_weights),
            _resident_spec((1, 256), single_buffer_weights),
            _resident_spec((256, 1), single_buffer_weights),
            pl.BlockSpec(memory_space=pltpu.MemorySpace.SMEM),  # b3 scalar
        ],
        out_specs=pl.BlockSpec((TB, 1), lambda i: (i, 0)),
    )

    out = pl.pallas_call(
        _discriminator_kernel,
        out_shape=jax.ShapeDtypeStruct((B_pad, 1), jnp.float32),
        grid_spec=grid_spec,
        compiler_params=pltpu.CompilerParams(
            dimension_semantics=("parallel",),          # v7x: use both TCs
            vmem_limit_bytes=int(vmem_limit)),
        cost_estimate=pl.CostEstimate(
            flops=flops, transcendentals=B_pad, bytes_accessed=bytes_accessed),
    )(x_p, w1b, b1, w2b, b2, w3b, b3s)

    return out[:B]


def init_params(key, img_size):
    """PyTorch-nn.Linear-style init (uniform +-1/sqrt(fan_in)).

    Weights stored as (in_features, out_features) = PyTorch weight.T,
    biases as (1, out_features).
    """
    dims = [(img_size ** 2, 512), (512, 256), (256, 1)]
    params = {}
    for i, (fan_in, fan_out) in enumerate(dims, start=1):
        key, kw, kb = jax.random.split(key, 3)
        bound = 1.0 / jnp.sqrt(fan_in)
        params[f"w{i}"] = jax.random.uniform(
            kw, (fan_in, fan_out), jnp.float32, -bound, bound)
        params[f"b{i}"] = jax.random.uniform(
            kb, (1, fan_out), jnp.float32, -bound, bound)
    return params


def reference_forward(x, params):
    h = jnp.maximum(x @ params["w1"] + params["b1"], 0.0)
    h = jnp.maximum(h @ params["w2"] + params["b2"], 0.0)
    return jax.nn.sigmoid(h @ params["w3"] + params["b3"])


if __name__ == "__main__":
    img_size = 16          # input features = img_size**2 = 256
    batch = 300            # non-multiple of the tile -> exercises the padded
                           # final tile and a 2-step grid

    key = jax.random.PRNGKey(0)
    key, kx = jax.random.split(key)
    x = jax.random.normal(kx, (batch, img_size ** 2), jnp.float32)
    params = init_params(key, img_size)

    out = jax.block_until_ready(discriminator_forward(x, params))
    ref = reference_forward(x, params)

    assert out.shape == (batch, 1)
    # bf16 matmul inputs with f32 accumulation -> loosened tolerance.
    max_err = float(jnp.max(jnp.abs(out - ref)))
    assert max_err < 2e-2, f"mismatch vs reference (max err {max_err})"
    assert bool(jnp.all(jnp.isfinite(out)))

    print("KERNEL_OK")
</pallas_src>

<mosaic_0001>
module attributes {stable_mosaic.version = 11 : i64} {
  func.func @_discriminator_kernel(%arg0: i32, %arg1: memref<256x256xf32, #tpu.memory_space<vmem>>, %arg2: memref<256x512xbf16, #tpu.memory_space<vmem>>, %arg3: memref<1x512xf32, #tpu.memory_space<vmem>>, %arg4: memref<512x256xbf16, #tpu.memory_space<vmem>>, %arg5: memref<1x256xf32, #tpu.memory_space<vmem>>, %arg6: memref<256x1xbf16, #tpu.memory_space<vmem>>, %arg7: memref<1xf32, #tpu.memory_space<smem>>, %arg8: memref<256x1xf32, #tpu.memory_space<vmem>>) attributes {dimension_semantics = [#tpu.dimension_semantics<parallel>], iteration_bounds = array<i64: 2>, scalar_prefetch = 0 : i64, scratch_operands = 0 : i64, tpu.core_type = #tpu.core_type<tc>, window_params = [{transform_indices = @transform_0, window_bounds = array<i64: 256, 256>}, {pipeline_mode = #tpu.pipeline_mode<synchronous>, transform_indices = @transform_1, window_bounds = array<i64: 256, 512>}, {pipeline_mode = #tpu.pipeline_mode<synchronous>, transform_indices = @transform_2, window_bounds = array<i64: 1, 512>}, {pipeline_mode = #tpu.pipeline_mode<synchronous>, transform_indices = @transform_3, window_bounds = array<i64: 512, 256>}, {pipeline_mode = #tpu.pipeline_mode<synchronous>, transform_indices = @transform_4, window_bounds = array<i64: 1, 256>}, {pipeline_mode = #tpu.pipeline_mode<synchronous>, transform_indices = @transform_5, window_bounds = array<i64: 256, 1>}, {transform_indices = @transform_6, window_bounds = array<i64: 1>}, {transform_indices = @transform_7, window_bounds = array<i64: 256, 1>}]} {
    %c0 = arith.constant 0 : index
    %c0_0 = arith.constant 0 : index
    %0 = vector.load %arg1[%c0, %c0_0] : memref<256x256xf32, #tpu.memory_space<vmem>>, vector<256x256xf32>
    %1 = arith.truncf %0 : vector<256x256xf32> to vector<256x256xbf16>
    %c0_1 = arith.constant 0 : index
    %c0_2 = arith.constant 0 : index
    %2 = vector.load %arg2[%c0_1, %c0_2] : memref<256x512xbf16, #tpu.memory_space<vmem>>, vector<256x512xbf16>
    %cst = arith.constant dense<0.000000e+00> : vector<256x512xf32>
    %3 = tpu.matmul %1, %2, %cst {dimension_numbers = #tpu.dot_dimension_numbers<[1], [0], [0], [1], [0, 0, 1, 1], [], []>} : vector<256x256xbf16>, vector<256x512xbf16>, vector<256x512xf32> -> vector<256x512xf32>
    %c0_3 = arith.constant 0 : index
    %c0_4 = arith.constant 0 : index
    %4 = vector.load %arg3[%c0_3, %c0_4] : memref<1x512xf32, #tpu.memory_space<vmem>>, vector<1x512xf32>
    %5 = vector.broadcast %4 : vector<1x512xf32> to vector<256x512xf32>
    %6 = arith.addf %3, %5 : vector<256x512xf32>
    %cst_5 = arith.constant 0.000000e+00 : f32
    %7 = vector.broadcast %cst_5 : f32 to vector<256x512xf32>
    %8 = arith.maximumf %6, %7 : vector<256x512xf32>
    %9 = arith.truncf %8 : vector<256x512xf32> to vector<256x512xbf16>
    %c0_6 = arith.constant 0 : index
    %c0_7 = arith.constant 0 : index
    %10 = vector.load %arg4[%c0_6, %c0_7] : memref<512x256xbf16, #tpu.memory_space<vmem>>, vector<512x256xbf16>
    %cst_8 = arith.constant dense<0.000000e+00> : vector<256x256xf32>
    %11 = tpu.matmul %9, %10, %cst_8 {dimension_numbers = #tpu.dot_dimension_numbers<[1], [0], [0], [1], [0, 0, 1, 1], [], []>} : vector<256x512xbf16>, vector<512x256xbf16>, vector<256x256xf32> -> vector<256x256xf32>
    %c0_9 = arith.constant 0 : index
    %c0_10 = arith.constant 0 : index
    %12 = vector.load %arg5[%c0_9, %c0_10] : memref<1x256xf32, #tpu.memory_space<vmem>>, vector<1x256xf32>
    %13 = vector.broadcast %12 : vector<1x256xf32> to vector<256x256xf32>
    %14 = arith.addf %11, %13 : vector<256x256xf32>
    %cst_11 = arith.constant 0.000000e+00 : f32
    %15 = vector.broadcast %cst_11 : f32 to vector<256x256xf32>
    %16 = arith.maximumf %14, %15 : vector<256x256xf32>
    %17 = arith.truncf %16 : vector<256x256xf32> to vector<256x256xbf16>
    %c0_12 = arith.constant 0 : index
    %c0_13 = arith.constant 0 : index
    %18 = vector.load %arg6[%c0_12, %c0_13] : memref<256x1xbf16, #tpu.memory_space<vmem>>, vector<256x1xbf16>
    %cst_14 = arith.constant dense<0.000000e+00> : vector<256x1xf32>
    %19 = tpu.matmul %17, %18, %cst_14 {dimension_numbers = #tpu.dot_dimension_numbers<[1], [0], [0], [1], [0, 0, 1, 1], [], []>} : vector<256x256xbf16>, vector<256x1xbf16>, vector<256x1xf32> -> vector<256x1xf32>
    %c0_15 = arith.constant 0 : index
    %20 = memref.load %arg7[%c0_15] : memref<1xf32, #tpu.memory_space<smem>>
    %21 = vector.broadcast %20 : f32 to vector<256x1xf32>
    %22 = arith.addf %19, %21 : vector<256x1xf32>
    %23 = arith.negf %22 : vector<256x1xf32>
    %24 = math.exp %23 : vector<256x1xf32>
    %cst_16 = arith.constant 1.000000e+00 : f32
    %25 = vector.broadcast %cst_16 : f32 to vector<256x1xf32>
    %26 = arith.addf %25, %24 : vector<256x1xf32>
    %27 = arith.divf %25, %26 : vector<256x1xf32>
    %c0_17 = arith.constant 0 : index
    %c0_18 = arith.constant 0 : index
    %28 = vector.load %arg8[%c0_17, %c0_18] : memref<256x1xf32, #tpu.memory_space<vmem>>, vector<256x1xf32>
    tpu.vector_store %arg8[%c0_17, %c0_18], %27 {strides = array<i32>} : memref<256x1xf32, #tpu.memory_space<vmem>>, vector<256x1xf32>,
    return
  }
  func.func @transform_0(%arg0: i32) -> (i32, i32) {
    %c0_i32 = arith.constant 0 : i32
    %c0_i32_0 = arith.constant 0 : i32
    return %arg0, %c0_i32 : i32, i32
  }
  func.func @transform_1(%arg0: i32) -> (i32, i32) {
    %c0_i32 = arith.constant 0 : i32
    %c0_i32_0 = arith.constant 0 : i32
    %c0_i32_1 = arith.constant 0 : i32
    return %c0_i32, %c0_i32_0 : i32, i32
  }
  func.func @transform_2(%arg0: i32) -> (i32, i32) {
    %c0_i32 = arith.constant 0 : i32
    %c0_i32_0 = arith.constant 0 : i32
    %c0_i32_1 = arith.constant 0 : i32
    return %c0_i32, %c0_i32_0 : i32, i32
  }
  func.func @transform_3(%arg0: i32) -> (i32, i32) {
    %c0_i32 = arith.constant 0 : i32
    %c0_i32_0 = arith.constant 0 : i32
    %c0_i32_1 = arith.constant 0 : i32
    return %c0_i32, %c0_i32_0 : i32, i32
  }
  func.func @transform_4(%arg0: i32) -> (i32, i32) {
    %c0_i32 = arith.constant 0 : i32
    %c0_i32_0 = arith.constant 0 : i32
    %c0_i32_1 = arith.constant 0 : i32
    return %c0_i32, %c0_i32_0 : i32, i32
  }
  func.func @transform_5(%arg0: i32) -> (i32, i32) {
    %c0_i32 = arith.constant 0 : i32
    %c0_i32_0 = arith.constant 0 : i32
    %c0_i32_1 = arith.constant 0 : i32
    return %c0_i32, %c0_i32_0 : i32, i32
  }
  func.func @transform_6(%arg0: i32) -> i32 {
    %c0_i32 = arith.constant 0 : i32
    %c0_i32_0 = arith.constant 0 : i32
    return %c0_i32 : i32
  }
  func.func @transform_7(%arg0: i32) -> (i32, i32) {
    %c0_i32 = arith.constant 0 : i32
    %c0_i32_0 = arith.constant 0 : i32
    return %arg0, %c0_i32 : i32, i32
  }
}

</mosaic_0001>

<llo_original>
// kernel: tpu_custom_call.1
$region0: #{tpu_custom_call.1}
  #allocation0 [shape = 'u32[]', space=smem, size = 0x4, offset = 0x4, fixed_abs, tag = 'smem constant byte address 0x4 - core index']
  #allocation1 [shape = 'u32[144,128]{1,0:T(1,128)}', space=vmem, size = 0x12000, scoped, tag = 'internal scratch']
  #allocation2 [shape = 'f32[1]{0:T(128)S(6)}', space=smem, size = 0x200, scoped, tag = 'scoped memory for tpu_custom_call.1']
  %s0 = inlined_call_operand.hbm [shape: f32[512,256], index: 0, kind: input, shape index: {}]
  %s1 = inlined_call_operand.hbm [shape: bf16[256,512], index: 1, kind: input, shape index: {}]
  %s2 = inlined_call_operand.vmem [shape: f32[1,512], index: 2, kind: input, shape index: {}]
  %s3 = inlined_call_operand.hbm [shape: bf16[512,256], index: 3, kind: input, shape index: {}]
  %s4 = inlined_call_operand.vmem [shape: f32[1,256], index: 4, kind: input, shape index: {}]
  %s5 = inlined_call_operand.vmem [shape: bf16[256,1], index: 5, kind: input, shape index: {}]
  %s6 = inlined_call_operand.<no memory space> [shape: f32[1], index: 6, kind: input, shape index: {}]
  %s7 = inlined_call_operand.vmem [shape: f32[512,1], index: 7, kind: output, shape index: {}]
  %s8 = sld [smem:[#allocation0]]
  $region73: #{tpu_custom_call.1} parent=0
    _
  %s10 = ssub.s32 1, %s8
  %s11 = scalar_select 0, %s10, %s8
  %12 = sst [smem:[#allocation2]] %s6
  $region1: #{tpu_custom_call.1} parent=0
    #allocation3 [shape = 'u8[524288]{0}', space=vmem, size = 0x80000, scoped, tag = 'input window, operand 0']
    #allocation4 [shape = 's32[2]{0}', space=sflag, size = 0x8, scoped, tag = 'scoped memory for tpu_custom_call.1']
    #allocation5 [shape = 'u8[262144]{0}', space=vmem, size = 0x40000, scoped, tag = 'input window, operand 1, single buffered']
    #allocation6 [shape = 's32[1]{0}', space=sflag, size = 0x4, scoped, tag = 'scoped memory for tpu_custom_call.1']
    #allocation7 [shape = 'u8[262144]{0}', space=vmem, size = 0x40000, scoped, tag = 'input window, operand 3, single buffered']
    %13 = vsyncpa [#allocation4], 0
    %s14 = scalar_lea.sflag [#allocation4], 1
    %15 = vsyncpa %s14, 0
    %16 = vsyncpa [#allocation6], 0
    loop: start=0, step=1, limit=4
    $region2: #{tpu_custom_call.1} parent=1 // loop_pre_header
      _
    $region3: #{tpu_custom_call.1} parent=1 // loop_header
      %s18 = sphi 0, %s22
      %p19 = scmp.ge.s32.totalorder %s18, 4
      %s28 = sphi 0, %s30
      %s31 = sphi 0, %s28
      %s32 = sphi 0, %s31
      %s48 = sphi 0, %s32
      %s52 = sphi 0, %s52
      %s54 = sphi 0, %s52
      %s55 = sphi 0, %s54
      %s69 = sphi 0, %s55
      %s73 = sphi 0, %s73
      %s75 = sphi 0, %s73
      %s76 = sphi 0, %s75
      %s90 = sphi 0, %s76
      %s94 = sphi 0, %s94
      %s96 = sphi 0, %s94
      %s97 = sphi 0, %s96
      %s111 = sphi 0, %s97
      %s115 = sphi 0, %s115
      %s117 = sphi 0, %s115
      %s118 = sphi 0, %s117
      %s132 = sphi 0, %s118
      %s136 = sphi 0, %s136
      %s138 = sphi 0, %s136
      %s139 = sphi 0, %s138
      %s153 = sphi 0, %s139
      %s157 = sphi 0, %s157
      %s159 = sphi 0, %s157
      %s160 = sphi 0, %s159
      %s174 = sphi 0, %s160
      %s180 = sphi 0, %s182
      %s183 = sphi 0, %s180
      %s184 = sphi 0, %s183
      %s200 = sphi 0, %s184
    $region4: #{tpu_custom_call.1} parent=1 // loop_header_branch
      %21 = sbr.rel (%p19) target = $region8
    $region5: #{tpu_custom_call.1} parent=1 // loop_body
      %s23 = ssub.s32 %s18, 1
      %s24 = ssub.s32 %s18, 2
      %s25 = sadd.s32 %s18, 1
      %s26 = ssub.s32 %s18, %s25
      %p27 = scmp.eq.s32.totalorder %s26, 0
      %s29 = sadd.s32 %s28, 1
      %s30 = scalar_select %p27, %s28, %s29
      %p33 = pneg %p27
      %p34 = scmp.eq.s32.totalorder %s18, 1
      %p35 = por %p33, %p34
      %p36 = scmp.ne.s32.totalorder %s28, %s31
      %p37 = scmp.eq.s32.totalorder %s18, 0
      %p38 = por %p36, %p37
      %p39 = scmp.ne.s32.totalorder %s28, %s31
      %p40 = scmp.eq.s32.totalorder %s23, 1
      %p41 = por %p39, %p40
      %p42 = scmp.ne.s32.totalorder %s31, %s32
      %p43 = scmp.eq.s32.totalorder %s23, 0
      %p44 = por %p42, %p43
      %p45 = scmp.ne.s32.totalorder %s31, %s32
      %p46 = scmp.eq.s32.totalorder %s24, 1
      %p47 = por %p45, %p46
      %p49 = scmp.ne.s32.totalorder %s32, %s48
      %p50 = scmp.eq.s32.totalorder %s24, 0
      %p51 = por %p49, %p50
      %s53 = sadd.s32 %s52, 1
      %p56 = scmp.eq.s32.totalorder %s18, 1
      %p57 = scmp.ne.s32.totalorder %s52, %s54
      %p58 = scmp.eq.s32.totalorder %s18, 0
      %p59 = por %p57, %p58
      %p60 = scmp.ne.s32.totalorder %s52, %s54
      %p61 = scmp.eq.s32.totalorder %s23, 1
      %p62 = por %p60, %p61
      %p63 = scmp.ne.s32.totalorder %s54, %s55
      %p64 = scmp.eq.s32.totalorder %s23, 0
      %p65 = por %p63, %p64
      %p66 = scmp.ne.s32.totalorder %s54, %s55
      %p67 = scmp.eq.s32.totalorder %s24, 1
      %p68 = por %p66, %p67
      %p70 = scmp.ne.s32.totalorder %s55, %s69
      %p71 = scmp.eq.s32.totalorder %s24, 0
      %p72 = por %p70, %p71
      %s74 = sadd.s32 %s73, 1
      %p77 = scmp.eq.s32.totalorder %s18, 1
      %p78 = scmp.ne.s32.totalorder %s73, %s75
      %p79 = scmp.eq.s32.totalorder %s18, 0
      %p80 = por %p78, %p79
      %p81 = scmp.ne.s32.totalorder %s73, %s75
      %p82 = scmp.eq.s32.totalorder %s23, 1
      %p83 = por %p81, %p82
      %p84 = scmp.ne.s32.totalorder %s75, %s76
      %p85 = scmp.eq.s32.totalorder %s23, 0
      %p86 = por %p84, %p85
      %p87 = scmp.ne.s32.totalorder %s75, %s76
      %p88 = scmp.eq.s32.totalorder %s24, 1
      %p89 = por %p87, %p88
      %p91 = scmp.ne.s32.totalorder %s76, %s90
      %p92 = scmp.eq.s32.totalorder %s24, 0
      %p93 = por %p91, %p92
      %s95 = sadd.s32 %s94, 1
      %p98 = scmp.eq.s32.totalorder %s18, 1
      %p99 = scmp.ne.s32.totalorder %s94, %s96
      %p100 = scmp.eq.s32.totalorder %s18, 0
      %p101 = por %p99, %p100
      %p102 = scmp.ne.s32.totalorder %s94, %s96
      %p103 = scmp.eq.s32.totalorder %s23, 1
      %p104 = por %p102, %p103
      %p105 = scmp.ne.s32.totalorder %s96, %s97
      %p106 = scmp.eq.s32.totalorder %s23, 0
      %p107 = por %p105, %p106
      %p108 = scmp.ne.s32.totalorder %s96, %s97
      %p109 = scmp.eq.s32.totalorder %s24, 1
      %p110 = por %p108, %p109
      %p112 = scmp.ne.s32.totalorder %s97, %s111
      %p113 = scmp.eq.s32.totalorder %s24, 0
      %p114 = por %p112, %p113
      %s116 = sadd.s32 %s115, 1
      %p119 = scmp.eq.s32.totalorder %s18, 1
      %p120 = scmp.ne.s32.totalorder %s115, %s117
      %p121 = scmp.eq.s32.totalorder %s18, 0
      %p122 = por %p120, %p121
      %p123 = scmp.ne.s32.totalorder %s115, %s117
      %p124 = scmp.eq.s32.totalorder %s23, 1
      %p125 = por %p123, %p124
      %p126 = scmp.ne.s32.totalorder %s117, %s118
      %p127 = scmp.eq.s32.totalorder %s23, 0
      %p128 = por %p126, %p127
      %p129 = scmp.ne.s32.totalorder %s117, %s118
      %p130 = scmp.eq.s32.totalorder %s24, 1
      %p131 = por %p129, %p130
      %p133 = scmp.ne.s32.totalorder %s118, %s132
      %p134 = scmp.eq.s32.totalorder %s24, 0
      %p135 = por %p133, %p134
      %s137 = sadd.s32 %s136, 1
      %p140 = scmp.eq.s32.totalorder %s18, 1
      %p141 = scmp.ne.s32.totalorder %s136, %s138
      %p142 = scmp.eq.s32.totalorder %s18, 0
      %p143 = por %p141, %p142
      %p144 = scmp.ne.s32.totalorder %s136, %s138
      %p145 = scmp.eq.s32.totalorder %s23, 1
      %p146 = por %p144, %p145
      %p147 = scmp.ne.s32.totalorder %s138, %s139
      %p148 = scmp.eq.s32.totalorder %s23, 0
      %p149 = por %p147, %p148
      %p150 = scmp.ne.s32.totalorder %s138, %s139
      %p151 = scmp.eq.s32.totalorder %s24, 1
      %p152 = por %p150, %p151
      %p154 = scmp.ne.s32.totalorder %s139, %s153
      %p155 = scmp.eq.s32.totalorder %s24, 0
      %p156 = por %p154, %p155
      %s158 = sadd.s32 %s157, 1
      %p161 = scmp.eq.s32.totalorder %s18, 1
      %p162 = scmp.ne.s32.totalorder %s157, %s159
      %p163 = scmp.eq.s32.totalorder %s18, 0
      %p164 = por %p162, %p163
      %p165 = scmp.ne.s32.totalorder %s157, %s159
      %p166 = scmp.eq.s32.totalorder %s23, 1
      %p167 = por %p165, %p166
      %p168 = scmp.ne.s32.totalorder %s159, %s160
      %p169 = scmp.eq.s32.totalorder %s23, 0
      %p170 = por %p168, %p169
      %p171 = scmp.ne.s32.totalorder %s159, %s160
      %p172 = scmp.eq.s32.totalorder %s24, 1
      %p173 = por %p171, %p172
      %p175 = scmp.ne.s32.totalorder %s160, %s174
      %p176 = scmp.eq.s32.totalorder %s24, 0
      %p177 = por %p175, %p176
      %s178 = ssub.s32 %s18, %s25
      %p179 = scmp.eq.s32.totalorder %s178, 0
      %s181 = sadd.s32 %s180, 1
      %s182 = scalar_select %p179, %s180, %s181
      %p185 = pneg %p179
      %p186 = scmp.eq.s32.totalorder %s18, 1
      %p187 = por %p185, %p186
      %p188 = scmp.ne.s32.totalorder %s180, %s183
      %p189 = scmp.eq.s32.totalorder %s18, 0
      %p190 = por %p188, %p189
      %p191 = scmp.ne.s32.totalorder %s180, %s183
      %p192 = scmp.eq.s32.totalorder %s23, 1
      %p193 = por %p191, %p192
      %p194 = scmp.ne.s32.totalorder %s183, %s184
      %p195 = scmp.eq.s32.totalorder %s23, 0
      %p196 = por %p194, %p195
      %p197 = scmp.ne.s32.totalorder %s183, %s184
      %p198 = scmp.eq.s32.totalorder %s24, 1
      %p199 = por %p197, %p198
      %p201 = scmp.ne.s32.totalorder %s184, %s200
      %p202 = scmp.eq.s32.totalorder %s24, 0
      %p203 = por %p201, %p202
      %p204 = scmp.le.s32.totalorder 1, %s18
      %p205 = scmp.lt.s32.totalorder %s18, 3
      %p206 = pnand %p204, %p205
      %p207 = pneg %p206
      // Predicated region
      $region9: #{tpu_custom_call.1} parent=5 // pred_check
        _
      $region10: #{tpu_custom_call.1} parent=5 // pred_check_branch
        %209 = sbr.rel (%p206) target = $region12
      $region11: #{tpu_custom_call.1} parent=5 // pred_region
        %s210 = ssub.s32 %s18, 1
        // Predicated region
        $region13: #{tpu_custom_call.1} parent=11 // pred_check
          %p211 = pneg %p65
        $region14: #{tpu_custom_call.1} parent=11 // pred_check_branch
          %213 = sbr.rel (%p211) target = $region16
        $region15: #{tpu_custom_call.1} parent=11 // pred_region
          %s215 = ssub.s32 8192, 8192
          %216 = vsyncadd [#allocation6], %s215
          %s217 = sshll.u32 [#allocation5], 4
          %s218 = int_to_ptr.vmem [resolvable:$true] %s217
          %223 = dma.hbm_to_vmem [thread:$0]  %s1, 8192, %s218, [#allocation6], 256, 256, 16
        $region16: #{tpu_custom_call.1} parent=11 // pred_fallthru
          _
        // Predicated region
        $region17: #{tpu_custom_call.1} parent=11 // pred_check
          %p224 = pneg %p86
        $region18: #{tpu_custom_call.1} parent=11 // pred_check_branch
          %226 = sbr.rel (%p224) target = $region20
        $region19: #{tpu_custom_call.1} parent=11 // pred_region
          _
        $region20: #{tpu_custom_call.1} parent=11 // pred_fallthru
          _
        // Predicated region
        $region21: #{tpu_custom_call.1} parent=11 // pred_check
          %p227 = pneg %p107
        $region22: #{tpu_custom_call.1} parent=11 // pred_check_branch
          %229 = sbr.rel (%p227) target = $region24
        $region23: #{tpu_custom_call.1} parent=11 // pred_region
          %s231 = ssub.s32 8192, 8192
          %232 = vsyncadd [#allocation6], %s231
          %s233 = sshll.u32 [#allocation7], 4
          %s234 = int_to_ptr.vmem [resolvable:$true] %s233
          %239 = dma.hbm_to_vmem [thread:$0]  %s3, 8192, %s234, [#allocation6], 128, 128, 8
        $region24: #{tpu_custom_call.1} parent=11 // pred_fallthru
          _
        // Predicated region
        $region25: #{tpu_custom_call.1} parent=11 // pred_check
          %p240 = pneg %p128
        $region26: #{tpu_custom_call.1} parent=11 // pred_check_branch
          %242 = sbr.rel (%p240) target = $region28
        $region27: #{tpu_custom_call.1} parent=11 // pred_region
          _
        $region28: #{tpu_custom_call.1} parent=11 // pred_fallthru
          _
        // Predicated region
        $region29: #{tpu_custom_call.1} parent=11 // pred_check
          %p243 = pneg %p149
        $region30: #{tpu_custom_call.1} parent=11 // pred_check_branch
          %245 = sbr.rel (%p243) target = $region32
        $region31: #{tpu_custom_call.1} parent=11 // pred_region
          _
        $region32: #{tpu_custom_call.1} parent=11 // pred_fallthru
          _
        // Predicated region
        $region33: #{tpu_custom_call.1} parent=11 // pred_check
          %p246 = pneg %p170
        $region34: #{tpu_custom_call.1} parent=11 // pred_check_branch
          %248 = sbr.rel (%p246) target = $region36
        $region35: #{tpu_custom_call.1} parent=11 // pred_region
          _
        $region36: #{tpu_custom_call.1} parent=11 // pred_fallthru
          _
      $region12: #{tpu_custom_call.1} parent=5 // pred_fallthru
        _
      %p249 = scmp.lt.s32.totalorder %s18, 2
      // Predicated region
      $region37: #{tpu_custom_call.1} parent=5 // pred_check
        %p250 = pneg %p249
      $region38: #{tpu_custom_call.1} parent=5 // pred_check_branch
        %252 = sbr.rel (%p250) target = $region40
      $region39: #{tpu_custom_call.1} parent=5 // pred_region
        // Predicated region
        $region41: #{tpu_custom_call.1} parent=39 // pred_check
          %p253 = pneg %p38
        $region42: #{tpu_custom_call.1} parent=39 // pred_check_branch
          %255 = sbr.rel (%p253) target = $region44
        $region43: #{tpu_custom_call.1} parent=39 // pred_region
          %s256 = sand.u32 %s28, 1
          %s257 = scalar_lea.sflag [#allocation4], %s256
          %s258 = sand.u32 %s28, 1
          %s259 = smul.addr %s258, 512
          %s260 = scalar_lea.vmem [#allocation3], %s259
          %s261 = smul.u32 32, %s18
          %s263 = ssub.s32 8192, 8192
          %264 = vsyncadd %s257, %s263
          %s265 = smul.addr %s261, 2
          %s266 = smul.addr %s265, 128
          %s267 = scalar_lea.hbm %s0, %s266
          %s268 = sshll.u32 %s260, 4
          %s269 = int_to_ptr.vmem [resolvable:$true] %s268
          %274 = dma.hbm_to_vmem [thread:$0]  %s267, 8192, %s269, %s257, 256, 256, 16
        $region44: #{tpu_custom_call.1} parent=39 // pred_fallthru
          _
      $region40: #{tpu_custom_call.1} parent=5 // pred_fallthru
        _
      %p275 = scmp.le.s32.totalorder 1, %s18
      %p276 = scmp.lt.s32.totalorder %s18, 3
      %p277 = pnand %p275, %p276
      %p278 = pneg %p277
      // Predicated region
      $region45: #{tpu_custom_call.1} parent=5 // pred_check
        _
      $region46: #{tpu_custom_call.1} parent=5 // pred_check_branch
        %280 = sbr.rel (%p277) target = $region48
      $region47: #{tpu_custom_call.1} parent=5 // pred_region
        %s281 = ssub.s32 %s18, 1
        %s282 = sand.u32 %s31, 1
        %s283 = scalar_lea.sflag [#allocation4], %s282
        %s284 = sand.u32 %s31, 1
        %s285 = smul.addr %s284, 512
        %s286 = scalar_lea.vmem [#allocation3], %s285
        // Predicated region
        $region49: #{tpu_custom_call.1} parent=47 // pred_check
          %p287 = pneg %p44
        $region50: #{tpu_custom_call.1} parent=47 // pred_check_branch
          %289 = sbr.rel (%p287) target = $region52
        $region51: #{tpu_custom_call.1} parent=47 // pred_region
          %290 = dma.done %s283, 8192
        $region52: #{tpu_custom_call.1} parent=47 // pred_fallthru
          _
        // Predicated region
        $region53: #{tpu_custom_call.1} parent=47 // pred_check
          %p291 = pneg %p65
        $region54: #{tpu_custom_call.1} parent=47 // pred_check_branch
          %293 = sbr.rel (%p291) target = $region56
        $region55: #{tpu_custom_call.1} parent=47 // pred_region
          %294 = dma.done [#allocation6], 8192
        $region56: #{tpu_custom_call.1} parent=47 // pred_fallthru
          _
        // Predicated region
        $region57: #{tpu_custom_call.1} parent=47 // pred_check
          %p295 = pneg %p107
        $region58: #{tpu_custom_call.1} parent=47 // pred_check_branch
          %297 = sbr.rel (%p295) target = $region60
        $region59: #{tpu_custom_call.1} parent=47 // pred_region
          %298 = dma.done [#allocation6], 8192
        $region60: #{tpu_custom_call.1} parent=47 // pred_fallthru
          _
        %s299 = sand.u32 %s31, 1
        %s300 = scalar_lea.sflag [#allocation4], %s299
        %s301 = sand.u32 %s31, 1
        %s302 = smul.addr %s301, 512
        %s303 = scalar_lea.vmem [#allocation3], %s302
        %p304 = pneg %p44
        %p305 = pneg %p41
        %p306 = pneg %p65
        %p307 = pneg %p62
        %p308 = pneg %p86
        %p309 = pneg %p83
        %p310 = pneg %p107
        %p311 = pneg %p104
        %p312 = pneg %p128
        %p313 = pneg %p125
        %p314 = pneg %p149
        %p315 = pneg %p146
        %p316 = pneg %p170
        %p317 = pneg %p167
        %p318 = pneg %p196
        %p319 = pneg %p193
        %s320 = smul.u32 32, %s23
        %p321 = scmp.lt.s32.totalorder %s320, 63
        %s322 = scalar_select %p321, %s320, 63
        %s323 = smul.addr %s322, 8
        %s324 = scalar_lea.vmem %s7, %s323
        %s325 = smul.u32 32, %s23
        %s326 = smul.u32 32, %s23
        %p327 = scmp.lt.s32.totalorder %s326, 63
        %s328 = scalar_select %p327, %s326, 63
        %s329 = smul.addr %s328, 8
        %s330 = scalar_lea.vmem %s7, %s329
        %s331 = smul.u32 32, %s23
        %v333 = vld [vmem:[%s286] sm:$0xff]
        %v334 = vld [vmem:[%s286 + $0x8] sm:$0xff]
        %v335 = vld [vmem:[%s286 + $0x10] sm:$0xff]
        %v336 = vld [vmem:[%s286 + $0x18] sm:$0xff]
        %v337 = vld [vmem:[%s286 + $0x20] sm:$0xff]
        %v338 = vld [vmem:[%s286 + $0x28] sm:$0xff]
        %v339 = vld [vmem:[%s286 + $0x30] sm:$0xff]
        %v340 = vld [vmem:[%s286 + $0x38] sm:$0xff]
        %v341 = vld [vmem:[%s286 + $0x40] sm:$0xff]
        %v342 = vld [vmem:[%s286 + $0x48] sm:$0xff]
        %v343 = vld [vmem:[%s286 + $0x50] sm:$0xff]
        %v344 = vld [vmem:[%s286 + $0x58] sm:$0xff]
        %v345 = vld [vmem:[%s286 + $0x60] sm:$0xff]
        %v346 = vld [vmem:[%s286 + $0x68] sm:$0xff]
        %v347 = vld [vmem:[%s286 + $0x70] sm:$0xff]
        %v348 = vld [vmem:[%s286 + $0x78] sm:$0xff]
        %v349 = vld [vmem:[%s286 + $0x80] sm:$0xff]
        %v350 = vld [vmem:[%s286 + $0x88] sm:$0xff]
        %v351 = vld [vmem:[%s286 + $0x90] sm:$0xff]
        %v352 = vld [vmem:[%s286 + $0x98] sm:$0xff]
        %v353 = vld [vmem:[%s286 + $0xa0] sm:$0xff]
        %v354 = vld [vmem:[%s286 + $0xa8] sm:$0xff]
        %v355 = vld [vmem:[%s286 + $0xb0] sm:$0xff]
        %v356 = vld [vmem:[%s286 + $0xb8] sm:$0xff]
        %v357 = vld [vmem:[%s286 + $0xc0] sm:$0xff]
        %v358 = vld [vmem:[%s286 + $0xc8] sm:$0xff]
        %v359 = vld [vmem:[%s286 + $0xd0] sm:$0xff]
        %v360 = vld [vmem:[%s286 + $0xd8] sm:$0xff]
        %v361 = vld [vmem:[%s286 + $0xe0] sm:$0xff]
        %v362 = vld [vmem:[%s286 + $0xe8] sm:$0xff]
        %v363 = vld [vmem:[%s286 + $0xf0] sm:$0xff]
        %v364 = vld [vmem:[%s286 + $0xf8] sm:$0xff]
        %v365 = vld [vmem:[%s286 + $0x100] sm:$0xff]
        %v366 = vld [vmem:[%s286 + $0x108] sm:$0xff]
        %v367 = vld [vmem:[%s286 + $0x110] sm:$0xff]
        %v368 = vld [vmem:[%s286 + $0x118] sm:$0xff]
        %v369 = vld [vmem:[%s286 + $0x120] sm:$0xff]
        %v370 = vld [vmem:[%s286 + $0x128] sm:$0xff]
        %v371 = vld [vmem:[%s286 + $0x130] sm:$0xff]
        %v372 = vld [vmem:[%s286 + $0x138] sm:$0xff]
        %v373 = vld [vmem:[%s286 + $0x140] sm:$0xff]
        %v374 = vld [vmem:[%s286 + $0x148] sm:$0xff]
        %v375 = vld [vmem:[%s286 + $0x150] sm:$0xff]
        %v376 = vld [vmem:[%s286 + $0x158] sm:$0xff]
        %v377 = vld [vmem:[%s286 + $0x160] sm:$0xff]
        %v378 = vld [vmem:[%s286 + $0x168] sm:$0xff]
        %v379 = vld [vmem:[%s286 + $0x170] sm:$0xff]
        %v380 = vld [vmem:[%s286 + $0x178] sm:$0xff]
        %v381 = vld [vmem:[%s286 + $0x180] sm:$0xff]
        %v382 = vld [vmem:[%s286 + $0x188] sm:$0xff]
        %v383 = vld [vmem:[%s286 + $0x190] sm:$0xff]
        %v384 = vld [vmem:[%s286 + $0x198] sm:$0xff]
        %v385 = vld [vmem:[%s286 + $0x1a0] sm:$0xff]
        %v386 = vld [vmem:[%s286 + $0x1a8] sm:$0xff]
        %v387 = vld [vmem:[%s286 + $0x1b0] sm:$0xff]
        %v388 = vld [vmem:[%s286 + $0x1b8] sm:$0xff]
        %v389 = vld [vmem:[%s286 + $0x1c0] sm:$0xff]
        %v390 = vld [vmem:[%s286 + $0x1c8] sm:$0xff]
        %v391 = vld [vmem:[%s286 + $0x1d0] sm:$0xff]
        %v392 = vld [vmem:[%s286 + $0x1d8] sm:$0xff]
        %v393 = vld [vmem:[%s286 + $0x1e0] sm:$0xff]
        %v394 = vld [vmem:[%s286 + $0x1e8] sm:$0xff]
        %v395 = vld [vmem:[%s286 + $0x1f0] sm:$0xff]
        %v396 = vld [vmem:[%s286 + $0x1f8] sm:$0xff]
        %v397 = vpack.c.bf16 %v335, %v333
        %v398 = vpack.c.bf16 %v336, %v334
        %v399 = vpack.c.bf16 %v339, %v337
        %v400 = vpack.c.bf16 %v340, %v338
        %v401 = vpack.c.bf16 %v343, %v341
        %v402 = vpack.c.bf16 %v344, %v342
        %v403 = vpack.c.bf16 %v347, %v345
        %v404 = vpack.c.bf16 %v348, %v346
        %v405 = vpack.c.bf16 %v351, %v349
        %v406 = vpack.c.bf16 %v352, %v350
        %v407 = vpack.c.bf16 %v355, %v353
        %v408 = vpack.c.bf16 %v356, %v354
        %v409 = vpack.c.bf16 %v359, %v357
        %v410 = vpack.c.bf16 %v360, %v358
        %v411 = vpack.c.bf16 %v363, %v361
        %v412 = vpack.c.bf16 %v364, %v362
        %v413 = vpack.c.bf16 %v367, %v365
        %v414 = vpack.c.bf16 %v368, %v366
        %v415 = vpack.c.bf16 %v371, %v369
        %v416 = vpack.c.bf16 %v372, %v370
        %v417 = vpack.c.bf16 %v375, %v373
        %v418 = vpack.c.bf16 %v376, %v374
        %v419 = vpack.c.bf16 %v379, %v377
        %v420 = vpack.c.bf16 %v380, %v378
        %v421 = vpack.c.bf16 %v383, %v381
        %v422 = vpack.c.bf16 %v384, %v382
        %v423 = vpack.c.bf16 %v387, %v385
        %v424 = vpack.c.bf16 %v388, %v386
        %v425 = vpack.c.bf16 %v391, %v389
        %v426 = vpack.c.bf16 %v392, %v390
        %v427 = vpack.c.bf16 %v395, %v393
        %v428 = vpack.c.bf16 %v396, %v394
        %v429 = vld [vmem:[#allocation5] sm:$0xff]
        %v430 = vld [vmem:[#allocation5 + $0x8] sm:$0xff]
        %v431 = vld [vmem:[#allocation5 + $0x10] sm:$0xff]
        %v432 = vld [vmem:[#allocation5 + $0x18] sm:$0xff]
        %v433 = vld [vmem:[#allocation5 + $0x20] sm:$0xff]
        %v434 = vld [vmem:[#allocation5 + $0x28] sm:$0xff]
        %v435 = vld [vmem:[#allocation5 + $0x30] sm:$0xff]
        %v436 = vld [vmem:[#allocation5 + $0x38] sm:$0xff]
        %v437 = vld [vmem:[#allocation5 + $0x40] sm:$0xff]
        %v438 = vld [vmem:[#allocation5 + $0x48] sm:$0xff]
        %v439 = vld [vmem:[#allocation5 + $0x50] sm:$0xff]
        %v440 = vld [vmem:[#allocation5 + $0x58] sm:$0xff]
        %v441 = vld [vmem:[#allocation5 + $0x60] sm:$0xff]
        %v442 = vld [vmem:[#allocation5 + $0x68] sm:$0xff]
        %v443 = vld [vmem:[#allocation5 + $0x70] sm:$0xff]
        %v444 = vld [vmem:[#allocation5 + $0x78] sm:$0xff]
        %v445 = vld [vmem:[#allocation5 + $0x80] sm:$0xff]
        %v446 = vld [vmem:[#allocation5 + $0x88] sm:$0xff]
        %v447 = vld [vmem:[#allocation5 + $0x90] sm:$0xff]
        %v448 = vld [vmem:[#allocation5 + $0x98] sm:$0xff]
        %v449 = vld [vmem:[#allocation5 + $0xa0] sm:$0xff]
        %v450 = vld [vmem:[#allocation5 + $0xa8] sm:$0xff]
        %v451 = vld [vmem:[#allocation5 + $0xb0] sm:$0xff]
        %v452 = vld [vmem:[#allocation5 + $0xb8] sm:$0xff]
        %v453 = vld [vmem:[#allocation5 + $0xc0] sm:$0xff]
        %v454 = vld [vmem:[#allocation5 + $0xc8] sm:$0xff]
        %v455 = vld [vmem:[#allocation5 + $0xd0] sm:$0xff]
        %v456 = vld [vmem:[#allocation5 + $0xd8] sm:$0xff]
        %v457 = vld [vmem:[#allocation5 + $0xe0] sm:$0xff]
        %v458 = vld [vmem:[#allocation5 + $0xe8] sm:$0xff]
        %v459 = vld [vmem:[#allocation5 + $0xf0] sm:$0xff]
        %v460 = vld [vmem:[#allocation5 + $0xf8] sm:$0xff]
        %v461 = vld [vmem:[#allocation5 + $0x100] sm:$0xff]
        %v462 = vld [vmem:[#allocation5 + $0x108] sm:$0xff]
        %v463 = vld [vmem:[#allocation5 + $0x110] sm:$0xff]
        %v464 = vld [vmem:[#allocation5 + $0x118] sm:$0xff]
        %v465 = vld [vmem:[#allocation5 + $0x120] sm:$0xff]
        %v466 = vld [vmem:[#allocation5 + $0x128] sm:$0xff]
        %v467 = vld [vmem:[#allocation5 + $0x130] sm:$0xff]
        %v468 = vld [vmem:[#allocation5 + $0x138] sm:$0xff]
        %v469 = vld [vmem:[#allocation5 + $0x140] sm:$0xff]
        %v470 = vld [vmem:[#allocation5 + $0x148] sm:$0xff]
        %v471 = vld [vmem:[#allocation5 + $0x150] sm:$0xff]
        %v472 = vld [vmem:[#allocation5 + $0x158] sm:$0xff]
        %v473 = vld [vmem:[#allocation5 + $0x160] sm:$0xff]
        %v474 = vld [vmem:[#allocation5 + $0x168] sm:$0xff]
        %v475 = vld [vmem:[#allocation5 + $0x170] sm:$0xff]
        %v476 = vld [vmem:[#allocation5 + $0x178] sm:$0xff]
        %v477 = vld [vmem:[#allocation5 + $0x180] sm:$0xff]
        %v478 = vld [vmem:[#allocation5 + $0x188] sm:$0xff]
        %v479 = vld [vmem:[#allocation5 + $0x190] sm:$0xff]
        %v480 = vld [vmem:[#allocation5 + $0x198] sm:$0xff]
        %v481 = vld [vmem:[#allocation5 + $0x1a0] sm:$0xff]
        %v482 = vld [vmem:[#allocation5 + $0x1a8] sm:$0xff]
        %v483 = vld [vmem:[#allocation5 + $0x1b0] sm:$0xff]
        %v484 = vld [vmem:[#allocation5 + $0x1b8] sm:$0xff]
        %v485 = vld [vmem:[#allocation5 + $0x1c0] sm:$0xff]
        %v486 = vld [vmem:[#allocation5 + $0x1c8] sm:$0xff]
        %v487 = vld [vmem:[#allocation5 + $0x1d0] sm:$0xff]
        %v488 = vld [vmem:[#allocation5 + $0x1d8] sm:$0xff]
        %v489 = vld [vmem:[#allocation5 + $0x1e0] sm:$0xff]
        %v490 = vld [vmem:[#allocation5 + $0x1e8] sm:$0xff]
        %v491 = vld [vmem:[#allocation5 + $0x1f0] sm:$0xff]
        %v492 = vld [vmem:[#allocation5 + $0x1f8] sm:$0xff]
        %v493 = vld [vmem:[%s2] sm:$0xf]
        %v495 = vlaneseq
        %v496 = vshrl.u32 %v495, 7
        %v497 = vsub.s32 0, %v496
        %v498 = vrot.slane %v493, %v497
        %v499 = vlaneseq
        %v500 = vshrl.u32 %v499, 7
        %v501 = vsub.s32 1, %v500
        %v502 = vrot.slane %v493, %v501
        %v503 = vlaneseq
        %v504 = vshrl.u32 %v503, 7
        %v505 = vsub.s32 2, %v504
        %v506 = vrot.slane %v493, %v505
        %v507 = vlaneseq
        %v508 = vshrl.u32 %v507, 7
        %v509 = vsub.s32 3, %v508
        %v510 = vrot.slane %v493, %v509
        %v579 = vunpack.c.l.b16 %v429
        %v580 = vunpack.c.h.b16 %v429
        %v581 = vunpack.c.l.b16 %v430
        %v582 = vunpack.c.h.b16 %v430
        %v583 = vunpack.c.l.b16 %v431
        %v584 = vunpack.c.h.b16 %v431
        %v585 = vunpack.c.l.b16 %v432
        %v586 = vunpack.c.h.b16 %v432
        %v587 = vunpack.c.l.b16 %v433
        %v588 = vunpack.c.h.b16 %v433
        %v589 = vunpack.c.l.b16 %v434
        %v590 = vunpack.c.h.b16 %v434
        %v591 = vunpack.c.l.b16 %v435
        %v592 = vunpack.c.h.b16 %v435
        %v593 = vunpack.c.l.b16 %v436
        %v594 = vunpack.c.h.b16 %v436
        %v595 = vunpack.c.l.b16 %v437
        %v596 = vunpack.c.h.b16 %v437
        %v597 = vunpack.c.l.b16 %v438
        %v598 = vunpack.c.h.b16 %v438
        %v599 = vunpack.c.l.b16 %v439
        %v600 = vunpack.c.h.b16 %v439
        %v601 = vunpack.c.l.b16 %v440
        %v602 = vunpack.c.h.b16 %v440
        %v603 = vunpack.c.l.b16 %v441
        %v604 = vunpack.c.h.b16 %v441
        %v605 = vunpack.c.l.b16 %v442
        %v606 = vunpack.c.h.b16 %v442
        %v607 = vunpack.c.l.b16 %v443
        %v608 = vunpack.c.h.b16 %v443
        %v609 = vunpack.c.l.b16 %v444
        %v610 = vunpack.c.h.b16 %v444
        %v611 = vunpack.c.l.b16 %v445
        %v612 = vunpack.c.h.b16 %v445
        %v613 = vunpack.c.l.b16 %v446
        %v614 = vunpack.c.h.b16 %v446
        %v615 = vunpack.c.l.b16 %v447
        %v616 = vunpack.c.h.b16 %v447
        %v617 = vunpack.c.l.b16 %v448
        %v618 = vunpack.c.h.b16 %v448
        %v619 = vunpack.c.l.b16 %v449
        %v620 = vunpack.c.h.b16 %v449
        %v621 = vunpack.c.l.b16 %v450
        %v622 = vunpack.c.h.b16 %v450
        %v623 = vunpack.c.l.b16 %v451
        %v624 = vunpack.c.h.b16 %v451
        %v625 = vunpack.c.l.b16 %v452
        %v626 = vunpack.c.h.b16 %v452
        %v627 = vunpack.c.l.b16 %v453
        %v628 = vunpack.c.h.b16 %v453
        %v629 = vunpack.c.l.b16 %v454
        %v630 = vunpack.c.h.b16 %v454
        %v631 = vunpack.c.l.b16 %v455
        %v632 = vunpack.c.h.b16 %v455
        %v633 = vunpack.c.l.b16 %v456
        %v634 = vunpack.c.h.b16 %v456
        %v635 = vunpack.c.l.b16 %v457
        %v636 = vunpack.c.h.b16 %v457
        %v637 = vunpack.c.l.b16 %v458
        %v638 = vunpack.c.h.b16 %v458
        %v639 = vunpack.c.l.b16 %v459
        %v640 = vunpack.c.h.b16 %v459
        %v641 = vunpack.c.l.b16 %v460
        %v642 = vunpack.c.h.b16 %v460
        %v643 = vunpack.c.l.b16 %v461
        %v644 = vunpack.c.h.b16 %v461
        %v645 = vunpack.c.l.b16 %v462
        %v646 = vunpack.c.h.b16 %v462
        %v647 = vunpack.c.l.b16 %v463
        %v648 = vunpack.c.h.b16 %v463
        %v649 = vunpack.c.l.b16 %v464
        %v650 = vunpack.c.h.b16 %v464
        %v651 = vunpack.c.l.b16 %v465
        %v652 = vunpack.c.h.b16 %v465
        %v653 = vunpack.c.l.b16 %v466
        %v654 = vunpack.c.h.b16 %v466
        %v655 = vunpack.c.l.b16 %v467
        %v656 = vunpack.c.h.b16 %v467
        %v657 = vunpack.c.l.b16 %v468
        %v658 = vunpack.c.h.b16 %v468
        %v659 = vunpack.c.l.b16 %v469
        %v660 = vunpack.c.h.b16 %v469
        %v661 = vunpack.c.l.b16 %v470
        %v662 = vunpack.c.h.b16 %v470
        %v663 = vunpack.c.l.b16 %v471
        %v664 = vunpack.c.h.b16 %v471
        %v665 = vunpack.c.l.b16 %v472
        %v666 = vunpack.c.h.b16 %v472
        %v667 = vunpack.c.l.b16 %v473
        %v668 = vunpack.c.h.b16 %v473
        %v669 = vunpack.c.l.b16 %v474
        %v670 = vunpack.c.h.b16 %v474
        %v671 = vunpack.c.l.b16 %v475
        %v672 = vunpack.c.h.b16 %v475
        %v673 = vunpack.c.l.b16 %v476
        %v674 = vunpack.c.h.b16 %v476
        %v675 = vunpack.c.l.b16 %v477
        %v676 = vunpack.c.h.b16 %v477
        %v677 = vunpack.c.l.b16 %v478
        %v678 = vunpack.c.h.b16 %v478
        %v679 = vunpack.c.l.b16 %v479
        %v680 = vunpack.c.h.b16 %v479
        %v681 = vunpack.c.l.b16 %v480
        %v682 = vunpack.c.h.b16 %v480
        %v683 = vunpack.c.l.b16 %v481
        %v684 = vunpack.c.h.b16 %v481
        %v685 = vunpack.c.l.b16 %v482
        %v686 = vunpack.c.h.b16 %v482
        %v687 = vunpack.c.l.b16 %v483
        %v688 = vunpack.c.h.b16 %v483
        %v689 = vunpack.c.l.b16 %v484
        %v690 = vunpack.c.h.b16 %v484
        %v691 = vunpack.c.l.b16 %v485
        %v692 = vunpack.c.h.b16 %v485
        %v693 = vunpack.c.l.b16 %v486
        %v694 = vunpack.c.h.b16 %v486
        %v695 = vunpack.c.l.b16 %v487
        %v696 = vunpack.c.h.b16 %v487
        %v697 = vunpack.c.l.b16 %v488
        %v698 = vunpack.c.h.b16 %v488
        %v699 = vunpack.c.l.b16 %v489
        %v700 = vunpack.c.h.b16 %v489
        %v701 = vunpack.c.l.b16 %v490
        %v702 = vunpack.c.h.b16 %v490
        %v703 = vunpack.c.l.b16 %v491
        %v704 = vunpack.c.h.b16 %v491
        %v705 = vunpack.c.l.b16 %v492
        %v706 = vunpack.c.h.b16 %v492
        %v707 = vpack.c.b16 %v583, %v579
        %v708 = vpack.c.b16 %v584, %v580
        %v709 = vpack.c.b16 %v585, %v581
        %v710 = vpack.c.b16 %v586, %v582
        %v711 = vpack.c.b16 %v591, %v587
        %v712 = vpack.c.b16 %v592, %v588
        %v713 = vpack.c.b16 %v593, %v589
        %v714 = vpack.c.b16 %v594, %v590
        %v715 = vpack.c.b16 %v599, %v595
        %v716 = vpack.c.b16 %v600, %v596
        %v717 = vpack.c.b16 %v601, %v597
        %v718 = vpack.c.b16 %v602, %v598
        %v719 = vpack.c.b16 %v607, %v603
        %v720 = vpack.c.b16 %v608, %v604
        %v721 = vpack.c.b16 %v609, %v605
        %v722 = vpack.c.b16 %v610, %v606
        %v723 = vpack.c.b16 %v615, %v611
        %v724 = vpack.c.b16 %v616, %v612
        %v725 = vpack.c.b16 %v617, %v613
        %v726 = vpack.c.b16 %v618, %v614
        %v727 = vpack.c.b16 %v623, %v619
        %v728 = vpack.c.b16 %v624, %v620
        %v729 = vpack.c.b16 %v625, %v621
        %v730 = vpack.c.b16 %v626, %v622
        %v731 = vpack.c.b16 %v631, %v627
        %v732 = vpack.c.b16 %v632, %v628
        %v733 = vpack.c.b16 %v633, %v629
        %v734 = vpack.c.b16 %v634, %v630
        %v735 = vpack.c.b16 %v639, %v635
        %v736 = vpack.c.b16 %v640, %v636
        %v737 = vpack.c.b16 %v641, %v637
        %v738 = vpack.c.b16 %v642, %v638
        %v739 = vpack.c.b16 %v647, %v643
        %v740 = vpack.c.b16 %v648, %v644
        %v741 = vpack.c.b16 %v649, %v645
        %v742 = vpack.c.b16 %v650, %v646
        %v743 = vpack.c.b16 %v655, %v651
        %v744 = vpack.c.b16 %v656, %v652
        %v745 = vpack.c.b16 %v657, %v653
        %v746 = vpack.c.b16 %v658, %v654
        %v747 = vpack.c.b16 %v663, %v659
        %v748 = vpack.c.b16 %v664, %v660
        %v749 = vpack.c.b16 %v665, %v661
        %v750 = vpack.c.b16 %v666, %v662
        %v751 = vpack.c.b16 %v671, %v667
        %v752 = vpack.c.b16 %v672, %v668
        %v753 = vpack.c.b16 %v673, %v669
        %v754 = vpack.c.b16 %v674, %v670
        %v755 = vpack.c.b16 %v679, %v675
        %v756 = vpack.c.b16 %v680, %v676
        %v757 = vpack.c.b16 %v681, %v677
        %v758 = vpack.c.b16 %v682, %v678
        %v759 = vpack.c.b16 %v687, %v683
        %v760 = vpack.c.b16 %v688, %v684
        %v761 = vpack.c.b16 %v689, %v685
        %v762 = vpack.c.b16 %v690, %v686
        %v763 = vpack.c.b16 %v695, %v691
        %v764 = vpack.c.b16 %v696, %v692
        %v765 = vpack.c.b16 %v697, %v693
        %v766 = vpack.c.b16 %v698, %v694
        %v767 = vpack.c.b16 %v703, %v699
        %v768 = vpack.c.b16 %v704, %v700
        %v769 = vpack.c.b16 %v705, %v701
        %v770 = vpack.c.b16 %v706, %v702
        %835 = vmatprep.subr.bf16.mxu0 %v708
        %836 = vmatpush1.bf16.msra.mxu0 %v707
        %837 = vmatprep.subr.bf16.mxu0 %v712
        %838 = vmatpush1.bf16.msra.mxu0 %v711
        %839 = vmatprep.subr.bf16.mxu0 %v716
        %840 = vmatpush1.bf16.msra.mxu0 %v715
        %841 = vmatprep.subr.bf16.mxu0 %v720
        %842 = vmatpush1.bf16.msra.mxu0 %v719
        %843 = vmatprep.subr.bf16.mxu0 %v724
        %844 = vmatpush1.bf16.msra.mxu0 %v723
        %845 = vmatprep.subr.bf16.mxu0 %v728
        %846 = vmatpush1.bf16.msra.mxu0 %v727
        %847 = vmatprep.subr.bf16.mxu0 %v732
        %848 = vmatpush1.bf16.msra.mxu0 %v731
        %849 = vmatprep.subr.bf16.mxu0 %v736
        %850 = vmatpush1.bf16.msra.mxu0 %v735
        %851 = vmatprep.subr.bf16.mxu0 %v740
        %852 = vmatpush1.bf16.msra.mxu0 %v739
        %853 = vmatprep.subr.bf16.mxu0 %v744
        %854 = vmatpush1.bf16.msra.mxu0 %v743
        %855 = vmatprep.subr.bf16.mxu0 %v748
        %856 = vmatpush1.bf16.msra.mxu0 %v747
        %857 = vmatprep.subr.bf16.mxu0 %v752
        %858 = vmatpush1.bf16.msra.mxu0 %v751
        %859 = vmatprep.subr.bf16.mxu0 %v756
        %860 = vmatpush1.bf16.msra.mxu0 %v755
        %861 = vmatprep.subr.bf16.mxu0 %v760
        %862 = vmatpush1.bf16.msra.mxu0 %v759
        %863 = vmatprep.subr.bf16.mxu0 %v764
        %864 = vmatpush1.bf16.msra.mxu0 %v763
        %865 = vmatprep.subr.bf16.mxu0 %v768
        %866 = vmatpush1.bf16.msra.mxu0 %v767
        %867 = vmatprep.mubr.bf16.mxu0 %v398
        %868 = vmatmul.mubr.bf16.gmra.mrb[0].mxu0 %v397
        %v869 = vpop.f32.mrb[0].mxu0
        %v870 = vadd.f32 %v498, %v869
        %v871 = vpop.f32.mrb[0].mxu0
        %v872 = vadd.f32 %v502, %v871
        %v873 = vpop.f32.mrb[0].mxu0
        %v874 = vadd.f32 %v498, %v873
        %v875 = vpop.f32.mrb[0].mxu0
        %v876 = vadd.f32 %v502, %v875
        %877 = vmatprep.mubr.bf16.mxu0 %v400
        %878 = vmatmul.mubr.bf16.gmra.mrb[0].mxu0 %v399
        %v879 = vpop.f32.mrb[0].mxu0
        %v880 = vadd.f32 %v498, %v879
        %v881 = vpop.f32.mrb[0].mxu0
        %v882 = vadd.f32 %v502, %v881
        %v883 = vpop.f32.mrb[0].mxu0
        %v884 = vadd.f32 %v498, %v883
        %v885 = vpop.f32.mrb[0].mxu0
        %v886 = vadd.f32 %v502, %v885
        %887 = vmatprep.mubr.bf16.mxu0 %v402
        %888 = vmatmul.mubr.bf16.gmra.mrb[0].mxu0 %v401
        %v889 = vpop.f32.mrb[0].mxu0
        %v890 = vadd.f32 %v498, %v889
        %v891 = vpop.f32.mrb[0].mxu0
        %v892 = vadd.f32 %v502, %v891
        %v893 = vpop.f32.mrb[0].mxu0
        %v894 = vadd.f32 %v498, %v893
        %v895 = vpop.f32.mrb[0].mxu0
        %v896 = vadd.f32 %v502, %v895
        %897 = vmatprep.mubr.bf16.mxu0 %v404
        %898 = vmatmul.mubr.bf16.gmra.mrb[0].mxu0 %v403
        %v899 = vpop.f32.mrb[0].mxu0
        %v900 = vadd.f32 %v498, %v899
        %v901 = vpop.f32.mrb[0].mxu0
        %v902 = vadd.f32 %v502, %v901
        %v903 = vpop.f32.mrb[0].mxu0
        %v904 = vadd.f32 %v498, %v903
        %v905 = vpop.f32.mrb[0].mxu0
        %v906 = vadd.f32 %v502, %v905
        %907 = vmatprep.mubr.bf16.mxu0 %v406
        %908 = vmatmul.mubr.bf16.gmra.mrb[0].mxu0 %v405
        %v909 = vpop.f32.mrb[0].mxu0
        %v910 = vadd.f32 %v498, %v909
        %v911 = vpop.f32.mrb[0].mxu0
        %v912 = vadd.f32 %v502, %v911
        %v913 = vpop.f32.mrb[0].mxu0
        %v914 = vadd.f32 %v498, %v913
        %v915 = vpop.f32.mrb[0].mxu0
        %v916 = vadd.f32 %v502, %v915
        %917 = vmatprep.mubr.bf16.mxu0 %v408
        %918 = vmatmul.mubr.bf16.gmra.mrb[0].mxu0 %v407
        %v919 = vpop.f32.mrb[0].mxu0
        %v920 = vadd.f32 %v498, %v919
        %v921 = vpop.f32.mrb[0].mxu0
        %v922 = vadd.f32 %v502, %v921
        %v923 = vpop.f32.mrb[0].mxu0
        %v924 = vadd.f32 %v498, %v923
        %v925 = vpop.f32.mrb[0].mxu0
        %v926 = vadd.f32 %v502, %v925
        %927 = vmatprep.mubr.bf16.mxu0 %v410
        %928 = vmatmul.mubr.bf16.gmra.mrb[0].mxu0 %v409
        %v929 = vpop.f32.mrb[0].mxu0
        %v930 = vadd.f32 %v498, %v929
        %v931 = vpop.f32.mrb[0].mxu0
        %v932 = vadd.f32 %v502, %v931
        %v933 = vpop.f32.mrb[0].mxu0
        %v934 = vadd.f32 %v498, %v933
        %v935 = vpop.f32.mrb[0].mxu0
        %v936 = vadd.f32 %v502, %v935
        %937 = vmatprep.mubr.bf16.mxu0 %v412
        %938 = vmatmul.mubr.bf16.gmra.mrb[0].mxu0 %v411
        %v939 = vpop.f32.mrb[0].mxu0
        %v940 = vadd.f32 %v498, %v939
        %v941 = vpop.f32.mrb[0].mxu0
        %v942 = vadd.f32 %v502, %v941
        %v943 = vpop.f32.mrb[0].mxu0
        %v944 = vadd.f32 %v498, %v943
        %v945 = vpop.f32.mrb[0].mxu0
        %v946 = vadd.f32 %v502, %v945
        %947 = vmatprep.mubr.bf16.mxu0 %v414
        %948 = vmatmul.mubr.bf16.gmra.mrb[0].mxu0 %v413
        %v949 = vpop.f32.mrb[0].mxu0
        %v950 = vadd.f32 %v498, %v949
        %v951 = vpop.f32.mrb[0].mxu0
        %v952 = vadd.f32 %v502, %v951
        %v953 = vpop.f32.mrb[0].mxu0
        %v954 = vadd.f32 %v498, %v953
        %v955 = vpop.f32.mrb[0].mxu0
        %v956 = vadd.f32 %v502, %v955
        %957 = vmatprep.mubr.bf16.mxu0 %v416
        %958 = vmatmul.mubr.bf16.gmra.mrb[0].mxu0 %v415
        %v959 = vpop.f32.mrb[0].mxu0
        %v960 = vadd.f32 %v498, %v959
        %v961 = vpop.f32.mrb[0].mxu0
        %v962 = vadd.f32 %v502, %v961
        %v963 = vpop.f32.mrb[0].mxu0
        %v964 = vadd.f32 %v498, %v963
        %v965 = vpop.f32.mrb[0].mxu0
        %v966 = vadd.f32 %v502, %v965
        %967 = vmatprep.mubr.bf16.mxu0 %v418
        %968 = vmatmul.mubr.bf16.gmra.mrb[0].mxu0 %v417
        %v969 = vpop.f32.mrb[0].mxu0
        %v970 = vadd.f32 %v498, %v969
        %v971 = vpop.f32.mrb[0].mxu0
        %v972 = vadd.f32 %v502, %v971
        %v973 = vpop.f32.mrb[0].mxu0
        %v974 = vadd.f32 %v498, %v973
        %v975 = vpop.f32.mrb[0].mxu0
        %v976 = vadd.f32 %v502, %v975
        %977 = vmatprep.mubr.bf16.mxu0 %v420
        %978 = vmatmul.mubr.bf16.gmra.mrb[0].mxu0 %v419
        %v979 = vpop.f32.mrb[0].mxu0
        %v980 = vadd.f32 %v498, %v979
        %v981 = vpop.f32.mrb[0].mxu0
        %v982 = vadd.f32 %v502, %v981
        %v983 = vpop.f32.mrb[0].mxu0
        %v984 = vadd.f32 %v498, %v983
        %v985 = vpop.f32.mrb[0].mxu0
        %v986 = vadd.f32 %v502, %v985
        %987 = vmatprep.mubr.bf16.mxu0 %v422
        %988 = vmatmul.mubr.bf16.gmra.mrb[0].mxu0 %v421
        %v989 = vpop.f32.mrb[0].mxu0
        %v990 = vadd.f32 %v498, %v989
        %v991 = vpop.f32.mrb[0].mxu0
        %v992 = vadd.f32 %v502, %v991
        %v993 = vpop.f32.mrb[0].mxu0
        %v994 = vadd.f32 %v498, %v993
        %v995 = vpop.f32.mrb[0].mxu0
        %v996 = vadd.f32 %v502, %v995
        %997 = vmatprep.mubr.bf16.mxu0 %v424
        %998 = vmatmul.mubr.bf16.gmra.mrb[0].mxu0 %v423
        %v999 = vpop.f32.mrb[0].mxu0
        %v1000 = vadd.f32 %v498, %v999
        %v1001 = vpop.f32.mrb[0].mxu0
        %v1002 = vadd.f32 %v502, %v1001
        %v1003 = vpop.f32.mrb[0].mxu0
        %v1004 = vadd.f32 %v498, %v1003
        %v1005 = vpop.f32.mrb[0].mxu0
        %v1006 = vadd.f32 %v502, %v1005
        %1007 = vmatprep.mubr.bf16.mxu0 %v426
        %1008 = vmatmul.mubr.bf16.gmra.mrb[0].mxu0 %v425
        %v1009 = vpop.f32.mrb[0].mxu0
        %v1010 = vadd.f32 %v498, %v1009
        %v1011 = vpop.f32.mrb[0].mxu0
        %v1012 = vadd.f32 %v502, %v1011
        %v1013 = vpop.f32.mrb[0].mxu0
        %v1014 = vadd.f32 %v498, %v1013
        %v1015 = vpop.f32.mrb[0].mxu0
        %v1016 = vadd.f32 %v502, %v1015
        %1017 = vmatprep.mubr.bf16.mxu0 %v428
        %1018 = vmatmul.mubr.bf16.gmra.mrb[0].mxu0 %v427
        %v1019 = vpop.f32.mrb[0].mxu0
        %v1020 = vadd.f32 %v498, %v1019
        %v1021 = vpop.f32.mrb[0].mxu0
        %v1022 = vadd.f32 %v502, %v1021
        %v1023 = vpop.f32.mrb[0].mxu0
        %v1024 = vadd.f32 %v498, %v1023
        %v1025 = vpop.f32.mrb[0].mxu0
        %v1026 = vadd.f32 %v502, %v1025
        %1027 = vdwg.mxu0
        %1028 = vmatprep.subr.bf16.mxu0 %v710
        %1029 = vmatpush1.bf16.msra.mxu0 %v709
        %1030 = vmatprep.subr.bf16.mxu0 %v714
        %1031 = vmatpush1.bf16.msra.mxu0 %v713
        %1032 = vmatprep.subr.bf16.mxu0 %v718
        %1033 = vmatpush1.bf16.msra.mxu0 %v717
        %1034 = vmatprep.subr.bf16.mxu0 %v722
        %1035 = vmatpush1.bf16.msra.mxu0 %v721
        %1036 = vmatprep.subr.bf16.mxu0 %v726
        %1037 = vmatpush1.bf16.msra.mxu0 %v725
        %1038 = vmatprep.subr.bf16.mxu0 %v730
        %1039 = vmatpush1.bf16.msra.mxu0 %v729
        %1040 = vmatprep.subr.bf16.mxu0 %v734
        %1041 = vmatpush1.bf16.msra.mxu0 %v733
        %1042 = vmatprep.subr.bf16.mxu0 %v738
        %1043 = vmatpush1.bf16.msra.mxu0 %v737
        %1044 = vmatprep.subr.bf16.mxu0 %v742
        %1045 = vmatpush1.bf16.msra.mxu0 %v741
        %1046 = vmatprep.subr.bf16.mxu0 %v746
        %1047 = vmatpush1.bf16.msra.mxu0 %v745
        %1048 = vmatprep.subr.bf16.mxu0 %v750
        %1049 = vmatpush1.bf16.msra.mxu0 %v749
        %1050 = vmatprep.subr.bf16.mxu0 %v754
        %1051 = vmatpush1.bf16.msra.mxu0 %v753
        %1052 = vmatprep.subr.bf16.mxu0 %v758
        %1053 = vmatpush1.bf16.msra.mxu0 %v757
        %1054 = vmatprep.subr.bf16.mxu0 %v762
        %1055 = vmatpush1.bf16.msra.mxu0 %v761
        %1056 = vmatprep.subr.bf16.mxu0 %v766
        %1057 = vmatpush1.bf16.msra.mxu0 %v765
        %1058 = vmatprep.subr.bf16.mxu0 %v770
        %1059 = vmatpush1.bf16.msra.mxu0 %v769
        %1060 = vmatprep.mubr.bf16.mxu0 %v398
        %1061 = vmatmul.mubr.bf16.gmra.mrb[0].mxu0 %v397
        %v1062 = vpop.f32.mrb[0].mxu0
        %v1063 = vadd.f32 %v506, %v1062
        %v1064 = vpop.f32.mrb[0].mxu0
        %v1065 = vadd.f32 %v510, %v1064
        %v1066 = vpop.f32.mrb[0].mxu0
        %v1067 = vadd.f32 %v506, %v1066
        %v1068 = vpop.f32.mrb[0].mxu0
        %v1069 = vadd.f32 %v510, %v1068
        %1070 = vmatprep.mubr.bf16.mxu0 %v400
        %1071 = vmatmul.mubr.bf16.gmra.mrb[0].mxu0 %v399
        %v1072 = vpop.f32.mrb[0].mxu0
        %v1073 = vadd.f32 %v506, %v1072
        %v1074 = vpop.f32.mrb[0].mxu0
        %v1075 = vadd.f32 %v510, %v1074
        %v1076 = vpop.f32.mrb[0].mxu0
        %v1077 = vadd.f32 %v506, %v1076
        %v1078 = vpop.f32.mrb[0].mxu0
        %v1079 = vadd.f32 %v510, %v1078
        %1080 = vmatprep.mubr.bf16.mxu0 %v402
        %1081 = vmatmul.mubr.bf16.gmra.mrb[0].mxu0 %v401
        %v1082 = vpop.f32.mrb[0].mxu0
        %v1083 = vadd.f32 %v506, %v1082
        %v1084 = vpop.f32.mrb[0].mxu0
        %v1085 = vadd.f32 %v510, %v1084
        %v1086 = vpop.f32.mrb[0].mxu0
        %v1087 = vadd.f32 %v506, %v1086
        %v1088 = vpop.f32.mrb[0].mxu0
        %v1089 = vadd.f32 %v510, %v1088
        %1090 = vmatprep.mubr.bf16.mxu0 %v404
        %1091 = vmatmul.mubr.bf16.gmra.mrb[0].mxu0 %v403
        %v1092 = vpop.f32.mrb[0].mxu0
        %v1093 = vadd.f32 %v506, %v1092
        %v1094 = vpop.f32.mrb[0].mxu0
        %v1095 = vadd.f32 %v510, %v1094
        %v1096 = vpop.f32.mrb[0].mxu0
        %v1097 = vadd.f32 %v506, %v1096
        %v1098 = vpop.f32.mrb[0].mxu0
        %v1099 = vadd.f32 %v510, %v1098
        %1100 = vmatprep.mubr.bf16.mxu0 %v406
        %1101 = vmatmul.mubr.bf16.gmra.mrb[0].mxu0 %v405
        %v1102 = vpop.f32.mrb[0].mxu0
        %v1103 = vadd.f32 %v506, %v1102
        %v1104 = vpop.f32.mrb[0].mxu0
        %v1105 = vadd.f32 %v510, %v1104
        %v1106 = vpop.f32.mrb[0].mxu0
        %v1107 = vadd.f32 %v506, %v1106
        %v1108 = vpop.f32.mrb[0].mxu0
        %v1109 = vadd.f32 %v510, %v1108
        %1110 = vmatprep.mubr.bf16.mxu0 %v408
        %1111 = vmatmul.mubr.bf16.gmra.mrb[0].mxu0 %v407
        %v1112 = vpop.f32.mrb[0].mxu0
        %v1113 = vadd.f32 %v506, %v1112
        %v1114 = vpop.f32.mrb[0].mxu0
        %v1115 = vadd.f32 %v510, %v1114
        %v1116 = vpop.f32.mrb[0].mxu0
        %v1117 = vadd.f32 %v506, %v1116
        %v1118 = vpop.f32.mrb[0].mxu0
        %v1119 = vadd.f32 %v510, %v1118
        %1120 = vmatprep.mubr.bf16.mxu0 %v410
        %1121 = vmatmul.mubr.bf16.gmra.mrb[0].mxu0 %v409
        %v1122 = vpop.f32.mrb[0].mxu0
        %v1123 = vadd.f32 %v506, %v1122
        %v1124 = vpop.f32.mrb[0].mxu0
        %v1125 = vadd.f32 %v510, %v1124
        %v1126 = vpop.f32.mrb[0].mxu0
        %v1127 = vadd.f32 %v506, %v1126
        %v1128 = vpop.f32.mrb[0].mxu0
        %v1129 = vadd.f32 %v510, %v1128
        %1130 = vmatprep.mubr.bf16.mxu0 %v412
        %1131 = vmatmul.mubr.bf16.gmra.mrb[0].mxu0 %v411
        %v1132 = vpop.f32.mrb[0].mxu0
        %v1133 = vadd.f32 %v506, %v1132
        %v1134 = vpop.f32.mrb[0].mxu0
        %v1135 = vadd.f32 %v510, %v1134
        %v1136 = vpop.f32.mrb[0].mxu0
        %v1137 = vadd.f32 %v506, %v1136
        %v1138 = vpop.f32.mrb[0].mxu0
        %v1139 = vadd.f32 %v510, %v1138
        %1140 = vmatprep.mubr.bf16.mxu0 %v414
        %1141 = vmatmul.mubr.bf16.gmra.mrb[0].mxu0 %v413
        %v1142 = vpop.f32.mrb[0].mxu0
        %v1143 = vadd.f32 %v506, %v1142
        %v1144 = vpop.f32.mrb[0].mxu0
        %v1145 = vadd.f32 %v510, %v1144
        %v1146 = vpop.f32.mrb[0].mxu0
        %v1147 = vadd.f32 %v506, %v1146
        %v1148 = vpop.f32.mrb[0].mxu0
        %v1149 = vadd.f32 %v510, %v1148
        %1150 = vmatprep.mubr.bf16.mxu0 %v416
        %1151 = vmatmul.mubr.bf16.gmra.mrb[0].mxu0 %v415
        %v1152 = vpop.f32.mrb[0].mxu0
        %v1153 = vadd.f32 %v506, %v1152
        %v1154 = vpop.f32.mrb[0].mxu0
        %v1155 = vadd.f32 %v510, %v1154
        %v1156 = vpop.f32.mrb[0].mxu0
        %v1157 = vadd.f32 %v506, %v1156
        %v1158 = vpop.f32.mrb[0].mxu0
        %v1159 = vadd.f32 %v510, %v1158
        %1160 = vmatprep.mubr.bf16.mxu0 %v418
        %1161 = vmatmul.mubr.bf16.gmra.mrb[0].mxu0 %v417
        %v1162 = vpop.f32.mrb[0].mxu0
        %v1163 = vadd.f32 %v506, %v1162
        %v1164 = vpop.f32.mrb[0].mxu0
        %v1165 = vadd.f32 %v510, %v1164
        %v1166 = vpop.f32.mrb[0].mxu0
        %v1167 = vadd.f32 %v506, %v1166
        %v1168 = vpop.f32.mrb[0].mxu0
        %v1169 = vadd.f32 %v510, %v1168
        %1170 = vmatprep.mubr.bf16.mxu0 %v420
        %1171 = vmatmul.mubr.bf16.gmra.mrb[0].mxu0 %v419
        %v1172 = vpop.f32.mrb[0].mxu0
        %v1173 = vadd.f32 %v506, %v1172
        %v1174 = vpop.f32.mrb[0].mxu0
        %v1175 = vadd.f32 %v510, %v1174
        %v1176 = vpop.f32.mrb[0].mxu0
        %v1177 = vadd.f32 %v506, %v1176
        %v1178 = vpop.f32.mrb[0].mxu0
        %v1179 = vadd.f32 %v510, %v1178
        %1180 = vmatprep.mubr.bf16.mxu0 %v422
        %1181 = vmatmul.mubr.bf16.gmra.mrb[0].mxu0 %v421
        %v1182 = vpop.f32.mrb[0].mxu0
        %v1183 = vadd.f32 %v506, %v1182
        %v1184 = vpop.f32.mrb[0].mxu0
        %v1185 = vadd.f32 %v510, %v1184
        %v1186 = vpop.f32.mrb[0].mxu0
        %v1187 = vadd.f32 %v506, %v1186
        %v1188 = vpop.f32.mrb[0].mxu0
        %v1189 = vadd.f32 %v510, %v1188
        %1190 = vmatprep.mubr.bf16.mxu0 %v424
        %1191 = vmatmul.mubr.bf16.gmra.mrb[0].mxu0 %v423
        %v1192 = vpop.f32.mrb[0].mxu0
        %v1193 = vadd.f32 %v506, %v1192
        %v1194 = vpop.f32.mrb[0].mxu0
        %v1195 = vadd.f32 %v510, %v1194
        %v1196 = vpop.f32.mrb[0].mxu0
        %v1197 = vadd.f32 %v506, %v1196
        %v1198 = vpop.f32.mrb[0].mxu0
        %v1199 = vadd.f32 %v510, %v1198
        %1200 = vmatprep.mubr.bf16.mxu0 %v426
        %1201 = vmatmul.mubr.bf16.gmra.mrb[0].mxu0 %v425
        %v1202 = vpop.f32.mrb[0].mxu0
        %v1203 = vadd.f32 %v506, %v1202
        %v1204 = vpop.f32.mrb[0].mxu0
        %v1205 = vadd.f32 %v510, %v1204
        %v1206 = vpop.f32.mrb[0].mxu0
        %v1207 = vadd.f32 %v506, %v1206
        %v1208 = vpop.f32.mrb[0].mxu0
        %v1209 = vadd.f32 %v510, %v1208
        %1210 = vmatprep.mubr.bf16.mxu0 %v428
        %1211 = vmatmul.mubr.bf16.gmra.mrb[0].mxu0 %v427
        %v1212 = vpop.f32.mrb[0].mxu0
        %v1213 = vadd.f32 %v506, %v1212
        %v1214 = vpop.f32.mrb[0].mxu0
        %v1215 = vadd.f32 %v510, %v1214
        %v1216 = vpop.f32.mrb[0].mxu0
        %v1217 = vadd.f32 %v506, %v1216
        %v1218 = vpop.f32.mrb[0].mxu0
        %v1219 = vadd.f32 %v510, %v1218
        %1220 = vdwg.mxu0
        %v1221 = vmax.f32 %v870, 0.0
        %v1222 = vmax.f32 %v872, 0.0
        %v1223 = vmax.f32 %v1063, 0.0
        %v1224 = vmax.f32 %v1065, 0.0
        %v1225 = vmax.f32 %v874, 0.0
        %v1226 = vmax.f32 %v876, 0.0
        %v1227 = vmax.f32 %v1067, 0.0
        %v1228 = vmax.f32 %v1069, 0.0
        %v1229 = vmax.f32 %v880, 0.0
        %v1230 = vmax.f32 %v882, 0.0
        %v1231 = vmax.f32 %v1073, 0.0
        %v1232 = vmax.f32 %v1075, 0.0
        %v1233 = vmax.f32 %v884, 0.0
        %v1234 = vmax.f32 %v886, 0.0
        %v1235 = vmax.f32 %v1077, 0.0
        %v1236 = vmax.f32 %v1079, 0.0
        %v1237 = vmax.f32 %v890, 0.0
        %v1238 = vmax.f32 %v892, 0.0
        %v1239 = vmax.f32 %v1083, 0.0
        %v1240 = vmax.f32 %v1085, 0.0
        %v1241 = vmax.f32 %v894, 0.0
        %v1242 = vmax.f32 %v896, 0.0
        %v1243 = vmax.f32 %v1087, 0.0
        %v1244 = vmax.f32 %v1089, 0.0
        %v1245 = vmax.f32 %v900, 0.0
        %v1246 = vmax.f32 %v902, 0.0
        %v1247 = vmax.f32 %v1093, 0.0
        %v1248 = vmax.f32 %v1095, 0.0
        %v1249 = vmax.f32 %v904, 0.0
        %v1250 = vmax.f32 %v906, 0.0
        %v1251 = vmax.f32 %v1097, 0.0
        %v1252 = vmax.f32 %v1099, 0.0
        %v1253 = vmax.f32 %v910, 0.0
        %v1254 = vmax.f32 %v912, 0.0
        %v1255 = vmax.f32 %v1103, 0.0
        %v1256 = vmax.f32 %v1105, 0.0
        %v1257 = vmax.f32 %v914, 0.0
        %v1258 = vmax.f32 %v916, 0.0
        %v1259 = vmax.f32 %v1107, 0.0
        %v1260 = vmax.f32 %v1109, 0.0
        %v1261 = vmax.f32 %v920, 0.0
        %v1262 = vmax.f32 %v922, 0.0
        %v1263 = vmax.f32 %v1113, 0.0
        %v1264 = vmax.f32 %v1115, 0.0
        %v1265 = vmax.f32 %v924, 0.0
        %v1266 = vmax.f32 %v926, 0.0
        %v1267 = vmax.f32 %v1117, 0.0
        %v1268 = vmax.f32 %v1119, 0.0
        %v1269 = vmax.f32 %v930, 0.0
        %v1270 = vmax.f32 %v932, 0.0
        %v1271 = vmax.f32 %v1123, 0.0
        %v1272 = vmax.f32 %v1125, 0.0
        %v1273 = vmax.f32 %v934, 0.0
        %v1274 = vmax.f32 %v936, 0.0
        %v1275 = vmax.f32 %v1127, 0.0
        %v1276 = vmax.f32 %v1129, 0.0
        %v1277 = vmax.f32 %v940, 0.0
        %v1278 = vmax.f32 %v942, 0.0
        %v1279 = vmax.f32 %v1133, 0.0
        %v1280 = vmax.f32 %v1135, 0.0
        %v1281 = vmax.f32 %v944, 0.0
        %v1282 = vmax.f32 %v946, 0.0
        %v1283 = vmax.f32 %v1137, 0.0
        %v1284 = vmax.f32 %v1139, 0.0
        %v1285 = vmax.f32 %v950, 0.0
        %v1286 = vmax.f32 %v952, 0.0
        %v1287 = vmax.f32 %v1143, 0.0
        %v1288 = vmax.f32 %v1145, 0.0
        %v1289 = vmax.f32 %v954, 0.0
        %v1290 = vmax.f32 %v956, 0.0
        %v1291 = vmax.f32 %v1147, 0.0
        %v1292 = vmax.f32 %v1149, 0.0
        %v1293 = vmax.f32 %v960, 0.0
        %v1294 = vmax.f32 %v962, 0.0
        %v1295 = vmax.f32 %v1153, 0.0
        %v1296 = vmax.f32 %v1155, 0.0
        %v1297 = vmax.f32 %v964, 0.0
        %v1298 = vmax.f32 %v966, 0.0
        %v1299 = vmax.f32 %v1157, 0.0
        %v1300 = vmax.f32 %v1159, 0.0
        %v1301 = vmax.f32 %v970, 0.0
        %v1302 = vmax.f32 %v972, 0.0
        %v1303 = vmax.f32 %v1163, 0.0
        %v1304 = vmax.f32 %v1165, 0.0
        %v1305 = vmax.f32 %v974, 0.0
        %v1306 = vmax.f32 %v976, 0.0
        %v1307 = vmax.f32 %v1167, 0.0
        %v1308 = vmax.f32 %v1169, 0.0
        %v1309 = vmax.f32 %v980, 0.0
        %v1310 = vmax.f32 %v982, 0.0
        %v1311 = vmax.f32 %v1173, 0.0
        %v1312 = vmax.f32 %v1175, 0.0
        %v1313 = vmax.f32 %v984, 0.0
        %v1314 = vmax.f32 %v986, 0.0
        %v1315 = vmax.f32 %v1177, 0.0
        %v1316 = vmax.f32 %v1179, 0.0
        %v1317 = vmax.f32 %v990, 0.0
        %v1318 = vmax.f32 %v992, 0.0
        %v1319 = vmax.f32 %v1183, 0.0
        %v1320 = vmax.f32 %v1185, 0.0
        %v1321 = vmax.f32 %v994, 0.0
        %v1322 = vmax.f32 %v996, 0.0
        %v1323 = vmax.f32 %v1187, 0.0
        %v1324 = vmax.f32 %v1189, 0.0
        %v1325 = vmax.f32 %v1000, 0.0
        %v1326 = vmax.f32 %v1002, 0.0
        %v1327 = vmax.f32 %v1193, 0.0
        %v1328 = vmax.f32 %v1195, 0.0
        %v1329 = vmax.f32 %v1004, 0.0
        %v1330 = vmax.f32 %v1006, 0.0
        %v1331 = vmax.f32 %v1197, 0.0
        %v1332 = vmax.f32 %v1199, 0.0
        %v1333 = vmax.f32 %v1010, 0.0
        %v1334 = vmax.f32 %v1012, 0.0
        %v1335 = vmax.f32 %v1203, 0.0
        %v1336 = vmax.f32 %v1205, 0.0
        %v1337 = vmax.f32 %v1014, 0.0
        %v1338 = vmax.f32 %v1016, 0.0
        %v1339 = vmax.f32 %v1207, 0.0
        %v1340 = vmax.f32 %v1209, 0.0
        %v1341 = vmax.f32 %v1020, 0.0
        %v1342 = vmax.f32 %v1022, 0.0
        %v1343 = vmax.f32 %v1213, 0.0
        %v1344 = vmax.f32 %v1215, 0.0
        %v1345 = vmax.f32 %v1024, 0.0
        %v1346 = vmax.f32 %v1026, 0.0
        %v1347 = vmax.f32 %v1217, 0.0
        %v1348 = vmax.f32 %v1219, 0.0
        %v1349 = vpack.c.bf16 %v1225, %v1221
        %v1350 = vpack.c.bf16 %v1226, %v1222
        %v1351 = vpack.c.bf16 %v1227, %v1223
        %v1352 = vpack.c.bf16 %v1228, %v1224
        %v1353 = vpack.c.bf16 %v1233, %v1229
        %v1354 = vpack.c.bf16 %v1234, %v1230
        %v1355 = vpack.c.bf16 %v1235, %v1231
        %v1356 = vpack.c.bf16 %v1236, %v1232
        %v1357 = vpack.c.bf16 %v1241, %v1237
        %v1358 = vpack.c.bf16 %v1242, %v1238
        %v1359 = vpack.c.bf16 %v1243, %v1239
        %v1360 = vpack.c.bf16 %v1244, %v1240
        %v1361 = vpack.c.bf16 %v1249, %v1245
        %v1362 = vpack.c.bf16 %v1250, %v1246
        %v1363 = vpack.c.bf16 %v1251, %v1247
        %v1364 = vpack.c.bf16 %v1252, %v1248
        %v1365 = vpack.c.bf16 %v1257, %v1253
        %v1366 = vpack.c.bf16 %v1258, %v1254
        %v1367 = vpack.c.bf16 %v1259, %v1255
        %v1368 = vpack.c.bf16 %v1260, %v1256
        %v1369 = vpack.c.bf16 %v1265, %v1261
        %v1370 = vpack.c.bf16 %v1266, %v1262
        %v1371 = vpack.c.bf16 %v1267, %v1263
        %v1372 = vpack.c.bf16 %v1268, %v1264
        %v1373 = vpack.c.bf16 %v1273, %v1269
        %v1374 = vpack.c.bf16 %v1274, %v1270
        %v1375 = vpack.c.bf16 %v1275, %v1271
        %v1376 = vpack.c.bf16 %v1276, %v1272
        %v1377 = vpack.c.bf16 %v1281, %v1277
        %v1378 = vpack.c.bf16 %v1282, %v1278
        %v1379 = vpack.c.bf16 %v1283, %v1279
        %v1380 = vpack.c.bf16 %v1284, %v1280
        %v1381 = vpack.c.bf16 %v1289, %v1285
        %v1382 = vpack.c.bf16 %v1290, %v1286
        %v1383 = vpack.c.bf16 %v1291, %v1287
        %v1384 = vpack.c.bf16 %v1292, %v1288
        %v1385 = vpack.c.bf16 %v1297, %v1293
        %v1386 = vpack.c.bf16 %v1298, %v1294
        %v1387 = vpack.c.bf16 %v1299, %v1295
        %v1388 = vpack.c.bf16 %v1300, %v1296
        %v1389 = vpack.c.bf16 %v1305, %v1301
        %v1390 = vpack.c.bf16 %v1306, %v1302
        %v1391 = vpack.c.bf16 %v1307, %v1303
        %v1392 = vpack.c.bf16 %v1308, %v1304
        %v1393 = vpack.c.bf16 %v1313, %v1309
        %v1394 = vpack.c.bf16 %v1314, %v1310
        %v1395 = vpack.c.bf16 %v1315, %v1311
        %v1396 = vpack.c.bf16 %v1316, %v1312
        %v1397 = vpack.c.bf16 %v1321, %v1317
        %v1398 = vpack.c.bf16 %v1322, %v1318
        %v1399 = vpack.c.bf16 %v1323, %v1319
        %v1400 = vpack.c.bf16 %v1324, %v1320
        %v1401 = vpack.c.bf16 %v1329, %v1325
        %v1402 = vpack.c.bf16 %v1330, %v1326
        %v1403 = vpack.c.bf16 %v1331, %v1327
        %v1404 = vpack.c.bf16 %v1332, %v1328
        %v1405 = vpack.c.bf16 %v1337, %v1333
        %v1406 = vpack.c.bf16 %v1338, %v1334
        %v1407 = vpack.c.bf16 %v1339, %v1335
        %v1408 = vpack.c.bf16 %v1340, %v1336
        %v1409 = vpack.c.bf16 %v1345, %v1341
        %v1410 = vpack.c.bf16 %v1346, %v1342
        %v1411 = vpack.c.bf16 %v1347, %v1343
        %v1412 = vpack.c.bf16 %v1348, %v1344
        %v1413 = vld [vmem:[#allocation7] sm:$0xff]
        %v1414 = vld [vmem:[#allocation7 + $0x8] sm:$0xff]
        %v1415 = vld [vmem:[#allocation7 + $0x10] sm:$0xff]
        %v1416 = vld [vmem:[#allocation7 + $0x18] sm:$0xff]
        %v1417 = vld [vmem:[#allocation7 + $0x20] sm:$0xff]
        %v1418 = vld [vmem:[#allocation7 + $0x28] sm:$0xff]
        %v1419 = vld [vmem:[#allocation7 + $0x30] sm:$0xff]
        %v1420 = vld [vmem:[#allocation7 + $0x38] sm:$0xff]
        %v1421 = vld [vmem:[#allocation7 + $0x40] sm:$0xff]
        %v1422 = vld [vmem:[#allocation7 + $0x48] sm:$0xff]
        %v1423 = vld [vmem:[#allocation7 + $0x50] sm:$0xff]
        %v1424 = vld [vmem:[#allocation7 + $0x58] sm:$0xff]
        %v1425 = vld [vmem:[#allocation7 + $0x60] sm:$0xff]
        %v1426 = vld [vmem:[#allocation7 + $0x68] sm:$0xff]
        %v1427 = vld [vmem:[#allocation7 + $0x70] sm:$0xff]
        %v1428 = vld [vmem:[#allocation7 + $0x78] sm:$0xff]
        %v1429 = vld [vmem:[#allocation7 + $0x80] sm:$0xff]
        %v1430 = vld [vmem:[#allocation7 + $0x88] sm:$0xff]
        %v1431 = vld [vmem:[#allocation7 + $0x90] sm:$0xff]
        %v1432 = vld [vmem:[#allocation7 + $0x98] sm:$0xff]
        %v1433 = vld [vmem:[#allocation7 + $0xa0] sm:$0xff]
        %v1434 = vld [vmem:[#allocation7 + $0xa8] sm:$0xff]
        %v1435 = vld [vmem:[#allocation7 + $0xb0] sm:$0xff]
        %v1436 = vld [vmem:[#allocation7 + $0xb8] sm:$0xff]
        %v1437 = vld [vmem:[#allocation7 + $0xc0] sm:$0xff]
        %v1438 = vld [vmem:[#allocation7 + $0xc8] sm:$0xff]
        %v1439 = vld [vmem:[#allocation7 + $0xd0] sm:$0xff]
        %v1440 = vld [vmem:[#allocation7 + $0xd8] sm:$0xff]
        %v1441 = vld [vmem:[#allocation7 + $0xe0] sm:$0xff]
        %v1442 = vld [vmem:[#allocation7 + $0xe8] sm:$0xff]
        %v1443 = vld [vmem:[#allocation7 + $0xf0] sm:$0xff]
        %v1444 = vld [vmem:[#allocation7 + $0xf8] sm:$0xff]
        %v1445 = vld [vmem:[#allocation7 + $0x100] sm:$0xff]
        %v1446 = vld [vmem:[#allocation7 + $0x108] sm:$0xff]
        %v1447 = vld [vmem:[#allocation7 + $0x110] sm:$0xff]
        %v1448 = vld [vmem:[#allocation7 + $0x118] sm:$0xff]
        %v1449 = vld [vmem:[#allocation7 + $0x120] sm:$0xff]
        %v1450 = vld [vmem:[#allocation7 + $0x128] sm:$0xff]
        %v1451 = vld [vmem:[#allocation7 + $0x130] sm:$0xff]
        %v1452 = vld [vmem:[#allocation7 + $0x138] sm:$0xff]
        %v1453 = vld [vmem:[#allocation7 + $0x140] sm:$0xff]
        %v1454 = vld [vmem:[#allocation7 + $0x148] sm:$0xff]
        %v1455 = vld [vmem:[#allocation7 + $0x150] sm:$0xff]
        %v1456 = vld [vmem:[#allocation7 + $0x158] sm:$0xff]
        %v1457 = vld [vmem:[#allocation7 + $0x160] sm:$0xff]
        %v1458 = vld [vmem:[#allocation7 + $0x168] sm:$0xff]
        %v1459 = vld [vmem:[#allocation7 + $0x170] sm:$0xff]
        %v1460 = vld [vmem:[#allocation7 + $0x178] sm:$0xff]
        %v1461 = vld [vmem:[#allocation7 + $0x180] sm:$0xff]
        %v1462 = vld [vmem:[#allocation7 + $0x188] sm:$0xff]
        %v1463 = vld [vmem:[#allocation7 + $0x190] sm:$0xff]
        %v1464 = vld [vmem:[#allocation7 + $0x198] sm:$0xff]
        %v1465 = vld [vmem:[#allocation7 + $0x1a0] sm:$0xff]
        %v1466 = vld [vmem:[#allocation7 + $0x1a8] sm:$0xff]
        %v1467 = vld [vmem:[#allocation7 + $0x1b0] sm:$0xff]
        %v1468 = vld [vmem:[#allocation7 + $0x1b8] sm:$0xff]
        %v1469 = vld [vmem:[#allocation7 + $0x1c0] sm:$0xff]
        %v1470 = vld [vmem:[#allocation7 + $0x1c8] sm:$0xff]
        %v1471 = vld [vmem:[#allocation7 + $0x1d0] sm:$0xff]
        %v1472 = vld [vmem:[#allocation7 + $0x1d8] sm:$0xff]
        %v1473 = vld [vmem:[#allocation7 + $0x1e0] sm:$0xff]
        %v1474 = vld [vmem:[#allocation7 + $0x1e8] sm:$0xff]
        %v1475 = vld [vmem:[#allocation7 + $0x1f0] sm:$0xff]
        %v1476 = vld [vmem:[#allocation7 + $0x1f8] sm:$0xff]
        %v1477 = vld [vmem:[%s4] sm:$0x3]
        %v1479 = vlaneseq
        %v1480 = vshrl.u32 %v1479, 7
        %v1481 = vsub.s32 0, %v1480
        %v1482 = vrot.slane %v1477, %v1481
        %v1483 = vlaneseq
        %v1484 = vshrl.u32 %v1483, 7
        %v1485 = vsub.s32 1, %v1484
        %v1486 = vrot.slane %v1477, %v1485
        %v1553 = vunpack.c.l.b16 %v1413
        %v1554 = vunpack.c.h.b16 %v1413
        %v1555 = vunpack.c.l.b16 %v1414
        %v1556 = vunpack.c.h.b16 %v1414
        %v1557 = vunpack.c.l.b16 %v1415
        %v1558 = vunpack.c.h.b16 %v1415
        %v1559 = vunpack.c.l.b16 %v1416
        %v1560 = vunpack.c.h.b16 %v1416
        %v1561 = vunpack.c.l.b16 %v1417
        %v1562 = vunpack.c.h.b16 %v1417
        %v1563 = vunpack.c.l.b16 %v1418
        %v1564 = vunpack.c.h.b16 %v1418
        %v1565 = vunpack.c.l.b16 %v1419
        %v1566 = vunpack.c.h.b16 %v1419
        %v1567 = vunpack.c.l.b16 %v1420
        %v1568 = vunpack.c.h.b16 %v1420
        %v1569 = vunpack.c.l.b16 %v1421
        %v1570 = vunpack.c.h.b16 %v1421
        %v1571 = vunpack.c.l.b16 %v1422
        %v1572 = vunpack.c.h.b16 %v1422
        %v1573 = vunpack.c.l.b16 %v1423
        %v1574 = vunpack.c.h.b16 %v1423
        %v1575 = vunpack.c.l.b16 %v1424
        %v1576 = vunpack.c.h.b16 %v1424
        %v1577 = vunpack.c.l.b16 %v1425
        %v1578 = vunpack.c.h.b16 %v1425
        %v1579 = vunpack.c.l.b16 %v1426
        %v1580 = vunpack.c.h.b16 %v1426
        %v1581 = vunpack.c.l.b16 %v1427
        %v1582 = vunpack.c.h.b16 %v1427
        %v1583 = vunpack.c.l.b16 %v1428
        %v1584 = vunpack.c.h.b16 %v1428
        %v1585 = vunpack.c.l.b16 %v1429
        %v1586 = vunpack.c.h.b16 %v1429
        %v1587 = vunpack.c.l.b16 %v1430
        %v1588 = vunpack.c.h.b16 %v1430
        %v1589 = vunpack.c.l.b16 %v1431
        %v1590 = vunpack.c.h.b16 %v1431
        %v1591 = vunpack.c.l.b16 %v1432
        %v1592 = vunpack.c.h.b16 %v1432
        %v1593 = vunpack.c.l.b16 %v1433
        %v1594 = vunpack.c.h.b16 %v1433
        %v1595 = vunpack.c.l.b16 %v1434
        %v1596 = vunpack.c.h.b16 %v1434
        %v1597 = vunpack.c.l.b16 %v1435
        %v1598 = vunpack.c.h.b16 %v1435
        %v1599 = vunpack.c.l.b16 %v1436
        %v1600 = vunpack.c.h.b16 %v1436
        %v1601 = vunpack.c.l.b16 %v1437
        %v1602 = vunpack.c.h.b16 %v1437
        %v1603 = vunpack.c.l.b16 %v1438
        %v1604 = vunpack.c.h.b16 %v1438
        %v1605 = vunpack.c.l.b16 %v1439
        %v1606 = vunpack.c.h.b16 %v1439
        %v1607 = vunpack.c.l.b16 %v1440
        %v1608 = vunpack.c.h.b16 %v1440
        %v1609 = vunpack.c.l.b16 %v1441
        %v1610 = vunpack.c.h.b16 %v1441
        %v1611 = vunpack.c.l.b16 %v1442
        %v1612 = vunpack.c.h.b16 %v1442
        %v1613 = vunpack.c.l.b16 %v1443
        %v1614 = vunpack.c.h.b16 %v1443
        %v1615 = vunpack.c.l.b16 %v1444
        %v1616 = vunpack.c.h.b16 %v1444
        %v1617 = vunpack.c.l.b16 %v1445
        %v1618 = vunpack.c.h.b16 %v1445
        %v1619 = vunpack.c.l.b16 %v1446
        %v1620 = vunpack.c.h.b16 %v1446
        %v1621 = vunpack.c.l.b16 %v1447
        %v1622 = vunpack.c.h.b16 %v1447
        %v1623 = vunpack.c.l.b16 %v1448
        %v1624 = vunpack.c.h.b16 %v1448
        %v1625 = vunpack.c.l.b16 %v1449
        %v1626 = vunpack.c.h.b16 %v1449
        %v1627 = vunpack.c.l.b16 %v1450
        %v1628 = vunpack.c.h.b16 %v1450
        %v1629 = vunpack.c.l.b16 %v1451
        %v1630 = vunpack.c.h.b16 %v1451
        %v1631 = vunpack.c.l.b16 %v1452
        %v1632 = vunpack.c.h.b16 %v1452
        %v1633 = vunpack.c.l.b16 %v1453
        %v1634 = vunpack.c.h.b16 %v1453
        %v1635 = vunpack.c.l.b16 %v1454
        %v1636 = vunpack.c.h.b16 %v1454
        %v1637 = vunpack.c.l.b16 %v1455
        %v1638 = vunpack.c.h.b16 %v1455
        %v1639 = vunpack.c.l.b16 %v1456
        %v1640 = vunpack.c.h.b16 %v1456
        %v1641 = vunpack.c.l.b16 %v1457
        %v1642 = vunpack.c.h.b16 %v1457
        %v1643 = vunpack.c.l.b16 %v1458
        %v1644 = vunpack.c.h.b16 %v1458
        %v1645 = vunpack.c.l.b16 %v1459
        %v1646 = vunpack.c.h.b16 %v1459
        %v1647 = vunpack.c.l.b16 %v1460
        %v1648 = vunpack.c.h.b16 %v1460
        %v1649 = vunpack.c.l.b16 %v1461
        %v1650 = vunpack.c.h.b16 %v1461
        %v1651 = vunpack.c.l.b16 %v1462
        %v1652 = vunpack.c.h.b16 %v1462
        %v1653 = vunpack.c.l.b16 %v1463
        %v1654 = vunpack.c.h.b16 %v1463
        %v1655 = vunpack.c.l.b16 %v1464
        %v1656 = vunpack.c.h.b16 %v1464
        %v1657 = vunpack.c.l.b16 %v1465
        %v1658 = vunpack.c.h.b16 %v1465
        %v1659 = vunpack.c.l.b16 %v1466
        %v1660 = vunpack.c.h.b16 %v1466
        %v1661 = vunpack.c.l.b16 %v1467
        %v1662 = vunpack.c.h.b16 %v1467
        %v1663 = vunpack.c.l.b16 %v1468
        %v1664 = vunpack.c.h.b16 %v1468
        %v1665 = vunpack.c.l.b16 %v1469
        %v1666 = vunpack.c.h.b16 %v1469
        %v1667 = vunpack.c.l.b16 %v1470
        %v1668 = vunpack.c.h.b16 %v1470
        %v1669 = vunpack.c.l.b16 %v1471
        %v1670 = vunpack.c.h.b16 %v1471
        %v1671 = vunpack.c.l.b16 %v1472
        %v1672 = vunpack.c.h.b16 %v1472
        %v1673 = vunpack.c.l.b16 %v1473
        %v1674 = vunpack.c.h.b16 %v1473
        %v1675 = vunpack.c.l.b16 %v1474
        %v1676 = vunpack.c.h.b16 %v1474
        %v1677 = vunpack.c.l.b16 %v1475
        %v1678 = vunpack.c.h.b16 %v1475
        %v1679 = vunpack.c.l.b16 %v1476
        %v1680 = vunpack.c.h.b16 %v1476
        %v1681 = vpack.c.b16 %v1555, %v1553
        %v1682 = vpack.c.b16 %v1556, %v1554
        %v1683 = vpack.c.b16 %v1559, %v1557
        %v1684 = vpack.c.b16 %v1560, %v1558
        %v1685 = vpack.c.b16 %v1563, %v1561
        %v1686 = vpack.c.b16 %v1564, %v1562
        %v1687 = vpack.c.b16 %v1567, %v1565
        %v1688 = vpack.c.b16 %v1568, %v1566
        %v1689 = vpack.c.b16 %v1571, %v1569
        %v1690 = vpack.c.b16 %v1572, %v1570
        %v1691 = vpack.c.b16 %v1575, %v1573
        %v1692 = vpack.c.b16 %v1576, %v1574
        %v1693 = vpack.c.b16 %v1579, %v1577
        %v1694 = vpack.c.b16 %v1580, %v1578
        %v1695 = vpack.c.b16 %v1583, %v1581
        %v1696 = vpack.c.b16 %v1584, %v1582
        %v1697 = vpack.c.b16 %v1587, %v1585
        %v1698 = vpack.c.b16 %v1588, %v1586
        %v1699 = vpack.c.b16 %v1591, %v1589
        %v1700 = vpack.c.b16 %v1592, %v1590
        %v1701 = vpack.c.b16 %v1595, %v1593
        %v1702 = vpack.c.b16 %v1596, %v1594
        %v1703 = vpack.c.b16 %v1599, %v1597
        %v1704 = vpack.c.b16 %v1600, %v1598
        %v1705 = vpack.c.b16 %v1603, %v1601
        %v1706 = vpack.c.b16 %v1604, %v1602
        %v1707 = vpack.c.b16 %v1607, %v1605
        %v1708 = vpack.c.b16 %v1608, %v1606
        %v1709 = vpack.c.b16 %v1611, %v1609
        %v1710 = vpack.c.b16 %v1612, %v1610
        %v1711 = vpack.c.b16 %v1615, %v1613
        %v1712 = vpack.c.b16 %v1616, %v1614
        %v1713 = vpack.c.b16 %v1619, %v1617
        %v1714 = vpack.c.b16 %v1620, %v1618
        %v1715 = vpack.c.b16 %v1623, %v1621
        %v1716 = vpack.c.b16 %v1624, %v1622
        %v1717 = vpack.c.b16 %v1627, %v1625
        %v1718 = vpack.c.b16 %v1628, %v1626
        %v1719 = vpack.c.b16 %v1631, %v1629
        %v1720 = vpack.c.b16 %v1632, %v1630
        %v1721 = vpack.c.b16 %v1635, %v1633
        %v1722 = vpack.c.b16 %v1636, %v1634
        %v1723 = vpack.c.b16 %v1639, %v1637
        %v1724 = vpack.c.b16 %v1640, %v1638
        %v1725 = vpack.c.b16 %v1643, %v1641
        %v1726 = vpack.c.b16 %v1644, %v1642
        %v1727 = vpack.c.b16 %v1647, %v1645
        %v1728 = vpack.c.b16 %v1648, %v1646
        %v1729 = vpack.c.b16 %v1651, %v1649
        %v1730 = vpack.c.b16 %v1652, %v1650
        %v1731 = vpack.c.b16 %v1655, %v1653
        %v1732 = vpack.c.b16 %v1656, %v1654
        %v1733 = vpack.c.b16 %v1659, %v1657
        %v1734 = vpack.c.b16 %v1660, %v1658
        %v1735 = vpack.c.b16 %v1663, %v1661
        %v1736 = vpack.c.b16 %v1664, %v1662
        %v1737 = vpack.c.b16 %v1667, %v1665
        %v1738 = vpack.c.b16 %v1668, %v1666
        %v1739 = vpack.c.b16 %v1671, %v1669
        %v1740 = vpack.c.b16 %v1672, %v1670
        %v1741 = vpack.c.b16 %v1675, %v1673
        %v1742 = vpack.c.b16 %v1676, %v1674
        %v1743 = vpack.c.b16 %v1679, %v1677
        %v1744 = vpack.c.b16 %v1680, %v1678
        %1809 = vmatprep.subr.bf16.mxu0 %v1682
        %1810 = vmatpush1.bf16.msra.mxu0 %v1681
        %1811 = vmatprep.subr.bf16.mxu0 %v1684
        %1812 = vmatpush1.bf16.msra.mxu0 %v1683
        %1813 = vmatprep.subr.bf16.mxu0 %v1686
        %1814 = vmatpush1.bf16.msra.mxu0 %v1685
        %1815 = vmatprep.subr.bf16.mxu0 %v1688
        %1816 = vmatpush1.bf16.msra.mxu0 %v1687
        %1817 = vmatprep.subr.bf16.mxu0 %v1690
        %1818 = vmatpush1.bf16.msra.mxu0 %v1689
        %1819 = vmatprep.subr.bf16.mxu0 %v1692
        %1820 = vmatpush1.bf16.msra.mxu0 %v1691
        %1821 = vmatprep.subr.bf16.mxu0 %v1694
        %1822 = vmatpush1.bf16.msra.mxu0 %v1693
        %1823 = vmatprep.subr.bf16.mxu0 %v1696
        %1824 = vmatpush1.bf16.msra.mxu0 %v1695
        %1825 = vmatprep.subr.bf16.mxu0 %v1698
        %1826 = vmatpush1.bf16.msra.mxu0 %v1697
        %1827 = vmatprep.subr.bf16.mxu0 %v1700
        %1828 = vmatpush1.bf16.msra.mxu0 %v1699
        %1829 = vmatprep.subr.bf16.mxu0 %v1702
        %1830 = vmatpush1.bf16.msra.mxu0 %v1701
        %1831 = vmatprep.subr.bf16.mxu0 %v1704
        %1832 = vmatpush1.bf16.msra.mxu0 %v1703
        %1833 = vmatprep.subr.bf16.mxu0 %v1706
        %1834 = vmatpush1.bf16.msra.mxu0 %v1705
        %1835 = vmatprep.subr.bf16.mxu0 %v1708
        %1836 = vmatpush1.bf16.msra.mxu0 %v1707
        %1837 = vmatprep.subr.bf16.mxu0 %v1710
        %1838 = vmatpush1.bf16.msra.mxu0 %v1709
        %1839 = vmatprep.subr.bf16.mxu0 %v1712
        %1840 = vmatpush1.bf16.msra.mxu0 %v1711
        %1841 = vmatprep.mubr.bf16.mxu0 %v1350
        %1842 = vmatmul.mubr.bf16.gmra.mrb[0].mxu0 %v1349
        %v1843 = vpop.f32.mrb[0].mxu0
        %v1844 = vadd.f32 %v1482, %v1843
        %v1845 = vpop.f32.mrb[0].mxu0
        %v1846 = vadd.f32 %v1486, %v1845
        %v1847 = vpop.f32.mrb[0].mxu0
        %v1848 = vadd.f32 %v1482, %v1847
        %v1849 = vpop.f32.mrb[0].mxu0
        %v1850 = vadd.f32 %v1486, %v1849
        %1851 = vmatprep.mubr.bf16.mxu0 %v1354
        %1852 = vmatmul.mubr.bf16.gmra.mrb[0].mxu0 %v1353
        %v1853 = vpop.f32.mrb[0].mxu0
        %v1854 = vadd.f32 %v1482, %v1853
        %v1855 = vpop.f32.mrb[0].mxu0
        %v1856 = vadd.f32 %v1486, %v1855
        %v1857 = vpop.f32.mrb[0].mxu0
        %v1858 = vadd.f32 %v1482, %v1857
        %v1859 = vpop.f32.mrb[0].mxu0
        %v1860 = vadd.f32 %v1486, %v1859
        %1861 = vmatprep.mubr.bf16.mxu0 %v1358
        %1862 = vmatmul.mubr.bf16.gmra.mrb[0].mxu0 %v1357
        %v1863 = vpop.f32.mrb[0].mxu0
        %v1864 = vadd.f32 %v1482, %v1863
        %v1865 = vpop.f32.mrb[0].mxu0
        %v1866 = vadd.f32 %v1486, %v1865
        %v1867 = vpop.f32.mrb[0].mxu0
        %v1868 = vadd.f32 %v1482, %v1867
        %v1869 = vpop.f32.mrb[0].mxu0
        %v1870 = vadd.f32 %v1486, %v1869
        %1871 = vmatprep.mubr.bf16.mxu0 %v1362
        %1872 = vmatmul.mubr.bf16.gmra.mrb[0].mxu0 %v1361
        %v1873 = vpop.f32.mrb[0].mxu0
        %v1874 = vadd.f32 %v1482, %v1873
        %v1875 = vpop.f32.mrb[0].mxu0
        %v1876 = vadd.f32 %v1486, %v1875
        %v1877 = vpop.f32.mrb[0].mxu0
        %v1878 = vadd.f32 %v1482, %v1877
        %v1879 = vpop.f32.mrb[0].mxu0
        %v1880 = vadd.f32 %v1486, %v1879
        %1881 = vmatprep.mubr.bf16.mxu0 %v1366
        %1882 = vmatmul.mubr.bf16.gmra.mrb[0].mxu0 %v1365
        %v1883 = vpop.f32.mrb[0].mxu0
        %v1884 = vadd.f32 %v1482, %v1883
        %v1885 = vpop.f32.mrb[0].mxu0
        %v1886 = vadd.f32 %v1486, %v1885
        %v1887 = vpop.f32.mrb[0].mxu0
        %v1888 = vadd.f32 %v1482, %v1887
        %v1889 = vpop.f32.mrb[0].mxu0
        %v1890 = vadd.f32 %v1486, %v1889
        %1891 = vmatprep.mubr.bf16.mxu0 %v1370
        %1892 = vmatmul.mubr.bf16.gmra.mrb[0].mxu0 %v1369
        %v1893 = vpop.f32.mrb[0].mxu0
        %v1894 = vadd.f32 %v1482, %v1893
        %v1895 = vpop.f32.mrb[0].mxu0
        %v1896 = vadd.f32 %v1486, %v1895
        %v1897 = vpop.f32.mrb[0].mxu0
        %v1898 = vadd.f32 %v1482, %v1897
        %v1899 = vpop.f32.mrb[0].mxu0
        %v1900 = vadd.f32 %v1486, %v1899
        %1901 = vmatprep.mubr.bf16.mxu0 %v1374
        %1902 = vmatmul.mubr.bf16.gmra.mrb[0].mxu0 %v1373
        %v1903 = vpop.f32.mrb[0].mxu0
        %v1904 = vadd.f32 %v1482, %v1903
        %v1905 = vpop.f32.mrb[0].mxu0
        %v1906 = vadd.f32 %v1486, %v1905
        %v1907 = vpop.f32.mrb[0].mxu0
        %v1908 = vadd.f32 %v1482, %v1907
        %v1909 = vpop.f32.mrb[0].mxu0
        %v1910 = vadd.f32 %v1486, %v1909
        %1911 = vmatprep.mubr.bf16.mxu0 %v1378
        %1912 = vmatmul.mubr.bf16.gmra.mrb[0].mxu0 %v1377
        %v1913 = vpop.f32.mrb[0].mxu0
        %v1914 = vadd.f32 %v1482, %v1913
        %v1915 = vpop.f32.mrb[0].mxu0
        %v1916 = vadd.f32 %v1486, %v1915
        %v1917 = vpop.f32.mrb[0].mxu0
        %v1918 = vadd.f32 %v1482, %v1917
        %v1919 = vpop.f32.mrb[0].mxu0
        %v1920 = vadd.f32 %v1486, %v1919
        %1921 = vmatprep.mubr.bf16.mxu0 %v1382
        %1922 = vmatmul.mubr.bf16.gmra.mrb[0].mxu0 %v1381
        %v1923 = vpop.f32.mrb[0].mxu0
        %v1924 = vadd.f32 %v1482, %v1923
        %v1925 = vpop.f32.mrb[0].mxu0
        %v1926 = vadd.f32 %v1486, %v1925
        %v1927 = vpop.f32.mrb[0].mxu0
        %v1928 = vadd.f32 %v1482, %v1927
        %v1929 = vpop.f32.mrb[0].mxu0
        %v1930 = vadd.f32 %v1486, %v1929
        %1931 = vmatprep.mubr.bf16.mxu0 %v1386
        %1932 = vmatmul.mubr.bf16.gmra.mrb[0].mxu0 %v1385
        %v1933 = vpop.f32.mrb[0].mxu0
        %v1934 = vadd.f32 %v1482, %v1933
        %v1935 = vpop.f32.mrb[0].mxu0
        %v1936 = vadd.f32 %v1486, %v1935
        %v1937 = vpop.f32.mrb[0].mxu0
        %v1938 = vadd.f32 %v1482, %v1937
        %v1939 = vpop.f32.mrb[0].mxu0
        %v1940 = vadd.f32 %v1486, %v1939
        %1941 = vmatprep.mubr.bf16.mxu0 %v1390
        %1942 = vmatmul.mubr.bf16.gmra.mrb[0].mxu0 %v1389
        %v1943 = vpop.f32.mrb[0].mxu0
        %v1944 = vadd.f32 %v1482, %v1943
        %v1945 = vpop.f32.mrb[0].mxu0
        %v1946 = vadd.f32 %v1486, %v1945
        %v1947 = vpop.f32.mrb[0].mxu0
        %v1948 = vadd.f32 %v1482, %v1947
        %v1949 = vpop.f32.mrb[0].mxu0
        %v1950 = vadd.f32 %v1486, %v1949
        %1951 = vmatprep.mubr.bf16.mxu0 %v1394
        %1952 = vmatmul.mubr.bf16.gmra.mrb[0].mxu0 %v1393
        %v1953 = vpop.f32.mrb[0].mxu0
        %v1954 = vadd.f32 %v1482, %v1953
        %v1955 = vpop.f32.mrb[0].mxu0
        %v1956 = vadd.f32 %v1486, %v1955
        %v1957 = vpop.f32.mrb[0].mxu0
        %v1958 = vadd.f32 %v1482, %v1957
        %v1959 = vpop.f32.mrb[0].mxu0
        %v1960 = vadd.f32 %v1486, %v1959
        %1961 = vmatprep.mubr.bf16.mxu0 %v1398
        %1962 = vmatmul.mubr.bf16.gmra.mrb[0].mxu0 %v1397
        %v1963 = vpop.f32.mrb[0].mxu0
        %v1964 = vadd.f32 %v1482, %v1963
        %v1965 = vpop.f32.mrb[0].mxu0
        %v1966 = vadd.f32 %v1486, %v1965
        %v1967 = vpop.f32.mrb[0].mxu0
        %v1968 = vadd.f32 %v1482, %v1967
        %v1969 = vpop.f32.mrb[0].mxu0
        %v1970 = vadd.f32 %v1486, %v1969
        %1971 = vmatprep.mubr.bf16.mxu0 %v1402
        %1972 = vmatmul.mubr.bf16.gmra.mrb[0].mxu0 %v1401
        %v1973 = vpop.f32.mrb[0].mxu0
        %v1974 = vadd.f32 %v1482, %v1973
        %v1975 = vpop.f32.mrb[0].mxu0
        %v1976 = vadd.f32 %v1486, %v1975
        %v1977 = vpop.f32.mrb[0].mxu0
        %v1978 = vadd.f32 %v1482, %v1977
        %v1979 = vpop.f32.mrb[0].mxu0
        %v1980 = vadd.f32 %v1486, %v1979
        %1981 = vmatprep.mubr.bf16.mxu0 %v1406
        %1982 = vmatmul.mubr.bf16.gmra.mrb[0].mxu0 %v1405
        %v1983 = vpop.f32.mrb[0].mxu0
        %v1984 = vadd.f32 %v1482, %v1983
        %v1985 = vpop.f32.mrb[0].mxu0
        %v1986 = vadd.f32 %v1486, %v1985
        %v1987 = vpop.f32.mrb[0].mxu0
        %v1988 = vadd.f32 %v1482, %v1987
        %v1989 = vpop.f32.mrb[0].mxu0
        %v1990 = vadd.f32 %v1486, %v1989
        %1991 = vmatprep.mubr.bf16.mxu0 %v1410
        %1992 = vmatmul.mubr.bf16.gmra.mrb[0].mxu0 %v1409
        %v1993 = vpop.f32.mrb[0].mxu0
        %v1994 = vadd.f32 %v1482, %v1993
        %v1995 = vpop.f32.mrb[0].mxu0
        %v1996 = vadd.f32 %v1486, %v1995
        %v1997 = vpop.f32.mrb[0].mxu0
        %v1998 = vadd.f32 %v1482, %v1997
        %v1999 = vpop.f32.mrb[0].mxu0
        %v2000 = vadd.f32 %v1486, %v1999
        %2001 = vdwg.mxu0
        %2002 = vmatprep.subr.bf16.mxu0 %v1714
        %2003 = vmatpush1.bf16.msra.mxu0 %v1713
        %2004 = vmatprep.subr.bf16.mxu0 %v1716
        %2005 = vmatpush1.bf16.msra.mxu0 %v1715
        %2006 = vmatprep.subr.bf16.mxu0 %v1718
        %2007 = vmatpush1.bf16.msra.mxu0 %v1717
        %2008 = vmatprep.subr.bf16.mxu0 %v1720
        %2009 = vmatpush1.bf16.msra.mxu0 %v1719
        %2010 = vmatprep.subr.bf16.mxu0 %v1722
        %2011 = vmatpush1.bf16.msra.mxu0 %v1721
        %2012 = vmatprep.subr.bf16.mxu0 %v1724
        %2013 = vmatpush1.bf16.msra.mxu0 %v1723
        %2014 = vmatprep.subr.bf16.mxu0 %v1726
        %2015 = vmatpush1.bf16.msra.mxu0 %v1725
        %2016 = vmatprep.subr.bf16.mxu0 %v1728
        %2017 = vmatpush1.bf16.msra.mxu0 %v1727
        %2018 = vmatprep.subr.bf16.mxu0 %v1730
        %2019 = vmatpush1.bf16.msra.mxu0 %v1729
        %2020 = vmatprep.subr.bf16.mxu0 %v1732
        %2021 = vmatpush1.bf16.msra.mxu0 %v1731
        %2022 = vmatprep.subr.bf16.mxu0 %v1734
        %2023 = vmatpush1.bf16.msra.mxu0 %v1733
        %2024 = vmatprep.subr.bf16.mxu0 %v1736
        %2025 = vmatpush1.bf16.msra.mxu0 %v1735
        %2026 = vmatprep.subr.bf16.mxu0 %v1738
        %2027 = vmatpush1.bf16.msra.mxu0 %v1737
        %2028 = vmatprep.subr.bf16.mxu0 %v1740
        %2029 = vmatpush1.bf16.msra.mxu0 %v1739
        %2030 = vmatprep.subr.bf16.mxu0 %v1742
        %2031 = vmatpush1.bf16.msra.mxu0 %v1741
        %2032 = vmatprep.subr.bf16.mxu0 %v1744
        %2033 = vmatpush1.bf16.msra.mxu0 %v1743
        %2034 = vmatprep.mubr.bf16.mxu0 %v1352
        %2035 = vmatmul.mubr.bf16.gmra.mrb[0].mxu0 %v1351
        %v2036 = vpop.f32.mrb[0].mxu0
        %v2037 = vadd.f32 %v1844, %v2036
        %v2038 = vpop.f32.mrb[0].mxu0
        %v2039 = vadd.f32 %v1846, %v2038
        %v2040 = vpop.f32.mrb[0].mxu0
        %v2041 = vadd.f32 %v1848, %v2040
        %v2042 = vpop.f32.mrb[0].mxu0
        %v2043 = vadd.f32 %v1850, %v2042
        %2044 = vmatprep.mubr.bf16.mxu0 %v1356
        %2045 = vmatmul.mubr.bf16.gmra.mrb[0].mxu0 %v1355
        %v2046 = vpop.f32.mrb[0].mxu0
        %v2047 = vadd.f32 %v1854, %v2046
        %v2048 = vpop.f32.mrb[0].mxu0
        %v2049 = vadd.f32 %v1856, %v2048
        %v2050 = vpop.f32.mrb[0].mxu0
        %v2051 = vadd.f32 %v1858, %v2050
        %v2052 = vpop.f32.mrb[0].mxu0
        %v2053 = vadd.f32 %v1860, %v2052
        %2054 = vmatprep.mubr.bf16.mxu0 %v1360
        %2055 = vmatmul.mubr.bf16.gmra.mrb[0].mxu0 %v1359
        %v2056 = vpop.f32.mrb[0].mxu0
        %v2057 = vadd.f32 %v1864, %v2056
        %v2058 = vpop.f32.mrb[0].mxu0
        %v2059 = vadd.f32 %v1866, %v2058
        %v2060 = vpop.f32.mrb[0].mxu0
        %v2061 = vadd.f32 %v1868, %v2060
        %v2062 = vpop.f32.mrb[0].mxu0
        %v2063 = vadd.f32 %v1870, %v2062
        %2064 = vmatprep.mubr.bf16.mxu0 %v1364
        %2065 = vmatmul.mubr.bf16.gmra.mrb[0].mxu0 %v1363
        %v2066 = vpop.f32.mrb[0].mxu0
        %v2067 = vadd.f32 %v1874, %v2066
        %v2068 = vpop.f32.mrb[0].mxu0
        %v2069 = vadd.f32 %v1876, %v2068
        %v2070 = vpop.f32.mrb[0].mxu0
        %v2071 = vadd.f32 %v1878, %v2070
        %v2072 = vpop.f32.mrb[0].mxu0
        %v2073 = vadd.f32 %v1880, %v2072
        %2074 = vmatprep.mubr.bf16.mxu0 %v1368
        %2075 = vmatmul.mubr.bf16.gmra.mrb[0].mxu0 %v1367
        %v2076 = vpop.f32.mrb[0].mxu0
        %v2077 = vadd.f32 %v1884, %v2076
        %v2078 = vpop.f32.mrb[0].mxu0
        %v2079 = vadd.f32 %v1886, %v2078
        %v2080 = vpop.f32.mrb[0].mxu0
        %v2081 = vadd.f32 %v1888, %v2080
        %v2082 = vpop.f32.mrb[0].mxu0
        %v2083 = vadd.f32 %v1890, %v2082
        %2084 = vmatprep.mubr.bf16.mxu0 %v1372
        %2085 = vmatmul.mubr.bf16.gmra.mrb[0].mxu0 %v1371
        %v2086 = vpop.f32.mrb[0].mxu0
        %v2087 = vadd.f32 %v1894, %v2086
        %v2088 = vpop.f32.mrb[0].mxu0
        %v2089 = vadd.f32 %v1896, %v2088
        %v2090 = vpop.f32.mrb[0].mxu0
        %v2091 = vadd.f32 %v1898, %v2090
        %v2092 = vpop.f32.mrb[0].mxu0
        %v2093 = vadd.f32 %v1900, %v2092
        %2094 = vmatprep.mubr.bf16.mxu0 %v1376
        %2095 = vmatmul.mubr.bf16.gmra.mrb[0].mxu0 %v1375
        %v2096 = vpop.f32.mrb[0].mxu0
        %v2097 = vadd.f32 %v1904, %v2096
        %v2098 = vpop.f32.mrb[0].mxu0
        %v2099 = vadd.f32 %v1906, %v2098
        %v2100 = vpop.f32.mrb[0].mxu0
        %v2101 = vadd.f32 %v1908, %v2100
        %v2102 = vpop.f32.mrb[0].mxu0
        %v2103 = vadd.f32 %v1910, %v2102
        %2104 = vmatprep.mubr.bf16.mxu0 %v1380
        %2105 = vmatmul.mubr.bf16.gmra.mrb[0].mxu0 %v1379
        %v2106 = vpop.f32.mrb[0].mxu0
        %v2107 = vadd.f32 %v1914, %v2106
        %v2108 = vpop.f32.mrb[0].mxu0
        %v2109 = vadd.f32 %v1916, %v2108
        %v2110 = vpop.f32.mrb[0].mxu0
        %v2111 = vadd.f32 %v1918, %v2110
        %v2112 = vpop.f32.mrb[0].mxu0
        %v2113 = vadd.f32 %v1920, %v2112
        %2114 = vmatprep.mubr.bf16.mxu0 %v1384
        %2115 = vmatmul.mubr.bf16.gmra.mrb[0].mxu0 %v1383
        %v2116 = vpop.f32.mrb[0].mxu0
        %v2117 = vadd.f32 %v1924, %v2116
        %v2118 = vpop.f32.mrb[0].mxu0
        %v2119 = vadd.f32 %v1926, %v2118
        %v2120 = vpop.f32.mrb[0].mxu0
        %v2121 = vadd.f32 %v1928, %v2120
        %v2122 = vpop.f32.mrb[0].mxu0
        %v2123 = vadd.f32 %v1930, %v2122
        %2124 = vmatprep.mubr.bf16.mxu0 %v1388
        %2125 = vmatmul.mubr.bf16.gmra.mrb[0].mxu0 %v1387
        %v2126 = vpop.f32.mrb[0].mxu0
        %v2127 = vadd.f32 %v1934, %v2126
        %v2128 = vpop.f32.mrb[0].mxu0
        %v2129 = vadd.f32 %v1936, %v2128
        %v2130 = vpop.f32.mrb[0].mxu0
        %v2131 = vadd.f32 %v1938, %v2130
        %v2132 = vpop.f32.mrb[0].mxu0
        %v2133 = vadd.f32 %v1940, %v2132
        %2134 = vmatprep.mubr.bf16.mxu0 %v1392
        %2135 = vmatmul.mubr.bf16.gmra.mrb[0].mxu0 %v1391
        %v2136 = vpop.f32.mrb[0].mxu0
        %v2137 = vadd.f32 %v1944, %v2136
        %v2138 = vpop.f32.mrb[0].mxu0
        %v2139 = vadd.f32 %v1946, %v2138
        %v2140 = vpop.f32.mrb[0].mxu0
        %v2141 = vadd.f32 %v1948, %v2140
        %v2142 = vpop.f32.mrb[0].mxu0
        %v2143 = vadd.f32 %v1950, %v2142
        %2144 = vmatprep.mubr.bf16.mxu0 %v1396
        %2145 = vmatmul.mubr.bf16.gmra.mrb[0].mxu0 %v1395
        %v2146 = vpop.f32.mrb[0].mxu0
        %v2147 = vadd.f32 %v1954, %v2146
        %v2148 = vpop.f32.mrb[0].mxu0
        %v2149 = vadd.f32 %v1956, %v2148
        %v2150 = vpop.f32.mrb[0].mxu0
        %v2151 = vadd.f32 %v1958, %v2150
        %v2152 = vpop.f32.mrb[0].mxu0
        %v2153 = vadd.f32 %v1960, %v2152
        %2154 = vmatprep.mubr.bf16.mxu0 %v1400
        %2155 = vmatmul.mubr.bf16.gmra.mrb[0].mxu0 %v1399
        %v2156 = vpop.f32.mrb[0].mxu0
        %v2157 = vadd.f32 %v1964, %v2156
        %v2158 = vpop.f32.mrb[0].mxu0
        %v2159 = vadd.f32 %v1966, %v2158
        %v2160 = vpop.f32.mrb[0].mxu0
        %v2161 = vadd.f32 %v1968, %v2160
        %v2162 = vpop.f32.mrb[0].mxu0
        %v2163 = vadd.f32 %v1970, %v2162
        %2164 = vmatprep.mubr.bf16.mxu0 %v1404
        %2165 = vmatmul.mubr.bf16.gmra.mrb[0].mxu0 %v1403
        %v2166 = vpop.f32.mrb[0].mxu0
        %v2167 = vadd.f32 %v1974, %v2166
        %v2168 = vpop.f32.mrb[0].mxu0
        %v2169 = vadd.f32 %v1976, %v2168
        %v2170 = vpop.f32.mrb[0].mxu0
        %v2171 = vadd.f32 %v1978, %v2170
        %v2172 = vpop.f32.mrb[0].mxu0
        %v2173 = vadd.f32 %v1980, %v2172
        %2174 = vmatprep.mubr.bf16.mxu0 %v1408
        %2175 = vmatmul.mubr.bf16.gmra.mrb[0].mxu0 %v1407
        %v2176 = vpop.f32.mrb[0].mxu0
        %v2177 = vadd.f32 %v1984, %v2176
        %v2178 = vpop.f32.mrb[0].mxu0
        %v2179 = vadd.f32 %v1986, %v2178
        %v2180 = vpop.f32.mrb[0].mxu0
        %v2181 = vadd.f32 %v1988, %v2180
        %v2182 = vpop.f32.mrb[0].mxu0
        %v2183 = vadd.f32 %v1990, %v2182
        %2184 = vmatprep.mubr.bf16.mxu0 %v1412
        %2185 = vmatmul.mubr.bf16.gmra.mrb[0].mxu0 %v1411
        %v2186 = vpop.f32.mrb[0].mxu0
        %v2187 = vadd.f32 %v1994, %v2186
        %v2188 = vpop.f32.mrb[0].mxu0
        %v2189 = vadd.f32 %v1996, %v2188
        %v2190 = vpop.f32.mrb[0].mxu0
        %v2191 = vadd.f32 %v1998, %v2190
        %v2192 = vpop.f32.mrb[0].mxu0
        %v2193 = vadd.f32 %v2000, %v2192
        %2194 = vdwg.mxu0
        %v2195 = vmax.f32 %v2037, 0.0
        %v2196 = vmax.f32 %v2039, 0.0
        %v2197 = vmax.f32 %v2041, 0.0
        %v2198 = vmax.f32 %v2043, 0.0
        %v2199 = vmax.f32 %v2047, 0.0
        %v2200 = vmax.f32 %v2049, 0.0
        %v2201 = vmax.f32 %v2051, 0.0
        %v2202 = vmax.f32 %v2053, 0.0
        %v2203 = vmax.f32 %v2057, 0.0
        %v2204 = vmax.f32 %v2059, 0.0
        %v2205 = vmax.f32 %v2061, 0.0
        %v2206 = vmax.f32 %v2063, 0.0
        %v2207 = vmax.f32 %v2067, 0.0
        %v2208 = vmax.f32 %v2069, 0.0
        %v2209 = vmax.f32 %v2071, 0.0
        %v2210 = vmax.f32 %v2073, 0.0
        %v2211 = vmax.f32 %v2077, 0.0
        %v2212 = vmax.f32 %v2079, 0.0
        %v2213 = vmax.f32 %v2081, 0.0
        %v2214 = vmax.f32 %v2083, 0.0
        %v2215 = vmax.f32 %v2087, 0.0
        %v2216 = vmax.f32 %v2089, 0.0
        %v2217 = vmax.f32 %v2091, 0.0
        %v2218 = vmax.f32 %v2093, 0.0
        %v2219 = vmax.f32 %v2097, 0.0
        %v2220 = vmax.f32 %v2099, 0.0
        %v2221 = vmax.f32 %v2101, 0.0
        %v2222 = vmax.f32 %v2103, 0.0
        %v2223 = vmax.f32 %v2107, 0.0
        %v2224 = vmax.f32 %v2109, 0.0
        %v2225 = vmax.f32 %v2111, 0.0
        %v2226 = vmax.f32 %v2113, 0.0
        %v2227 = vmax.f32 %v2117, 0.0
        %v2228 = vmax.f32 %v2119, 0.0
        %v2229 = vmax.f32 %v2121, 0.0
        %v2230 = vmax.f32 %v2123, 0.0
        %v2231 = vmax.f32 %v2127, 0.0
        %v2232 = vmax.f32 %v2129, 0.0
        %v2233 = vmax.f32 %v2131, 0.0
        %v2234 = vmax.f32 %v2133, 0.0
        %v2235 = vmax.f32 %v2137, 0.0
        %v2236 = vmax.f32 %v2139, 0.0
        %v2237 = vmax.f32 %v2141, 0.0
        %v2238 = vmax.f32 %v2143, 0.0
        %v2239 = vmax.f32 %v2147, 0.0
        %v2240 = vmax.f32 %v2149, 0.0
        %v2241 = vmax.f32 %v2151, 0.0
        %v2242 = vmax.f32 %v2153, 0.0
        %v2243 = vmax.f32 %v2157, 0.0
        %v2244 = vmax.f32 %v2159, 0.0
        %v2245 = vmax.f32 %v2161, 0.0
        %v2246 = vmax.f32 %v2163, 0.0
        %v2247 = vmax.f32 %v2167, 0.0
        %v2248 = vmax.f32 %v2169, 0.0
        %v2249 = vmax.f32 %v2171, 0.0
        %v2250 = vmax.f32 %v2173, 0.0
        %v2251 = vmax.f32 %v2177, 0.0
        %v2252 = vmax.f32 %v2179, 0.0
        %v2253 = vmax.f32 %v2181, 0.0
        %v2254 = vmax.f32 %v2183, 0.0
        %v2255 = vmax.f32 %v2187, 0.0
        %v2256 = vmax.f32 %v2189, 0.0
        %v2257 = vmax.f32 %v2191, 0.0
        %v2258 = vmax.f32 %v2193, 0.0
        %v2259 = vpack.c.bf16 %v2197, %v2195
        %v2260 = vpack.c.bf16 %v2198, %v2196
        %v2261 = vpack.c.bf16 %v2201, %v2199
        %v2262 = vpack.c.bf16 %v2202, %v2200
        %v2263 = vpack.c.bf16 %v2205, %v2203
        %v2264 = vpack.c.bf16 %v2206, %v2204
        %v2265 = vpack.c.bf16 %v2209, %v2207
        %v2266 = vpack.c.bf16 %v2210, %v2208
        %v2267 = vpack.c.bf16 %v2213, %v2211
        %v2268 = vpack.c.bf16 %v2214, %v2212
        %v2269 = vpack.c.bf16 %v2217, %v2215
        %v2270 = vpack.c.bf16 %v2218, %v2216
        %v2271 = vpack.c.bf16 %v2221, %v2219
        %v2272 = vpack.c.bf16 %v2222, %v2220
        %v2273 = vpack.c.bf16 %v2225, %v2223
        %v2274 = vpack.c.bf16 %v2226, %v2224
        %v2275 = vpack.c.bf16 %v2229, %v2227
        %v2276 = vpack.c.bf16 %v2230, %v2228
        %v2277 = vpack.c.bf16 %v2233, %v2231
        %v2278 = vpack.c.bf16 %v2234, %v2232
        %v2279 = vpack.c.bf16 %v2237, %v2235
        %v2280 = vpack.c.bf16 %v2238, %v2236
        %v2281 = vpack.c.bf16 %v2241, %v2239
        %v2282 = vpack.c.bf16 %v2242, %v2240
        %v2283 = vpack.c.bf16 %v2245, %v2243
        %v2284 = vpack.c.bf16 %v2246, %v2244
        %v2285 = vpack.c.bf16 %v2249, %v2247
        %v2286 = vpack.c.bf16 %v2250, %v2248
        %v2287 = vpack.c.bf16 %v2253, %v2251
        %v2288 = vpack.c.bf16 %v2254, %v2252
        %v2289 = vpack.c.bf16 %v2257, %v2255
        %v2290 = vpack.c.bf16 %v2258, %v2256
        %v2291 = vld [vmem:[%s5] sm:$0xf]
        %v2292 = vld [vmem:[%s5 + $0x4] sm:$0xf]
        %v2293 = vld [vmem:[%s5 + $0x8] sm:$0xf]
        %v2294 = vld [vmem:[%s5 + $0xc] sm:$0xf]
        %v2295 = vld [vmem:[%s5 + $0x10] sm:$0xf]
        %v2296 = vld [vmem:[%s5 + $0x14] sm:$0xf]
        %v2297 = vld [vmem:[%s5 + $0x18] sm:$0xf]
        %v2298 = vld [vmem:[%s5 + $0x1c] sm:$0xf]
        %v2299 = vld [vmem:[%s5 + $0x20] sm:$0xf]
        %v2300 = vld [vmem:[%s5 + $0x24] sm:$0xf]
        %v2301 = vld [vmem:[%s5 + $0x28] sm:$0xf]
        %v2302 = vld [vmem:[%s5 + $0x2c] sm:$0xf]
        %v2303 = vld [vmem:[%s5 + $0x30] sm:$0xf]
        %v2304 = vld [vmem:[%s5 + $0x34] sm:$0xf]
        %v2305 = vld [vmem:[%s5 + $0x38] sm:$0xf]
        %v2306 = vld [vmem:[%s5 + $0x3c] sm:$0xf]
        %v2307 = vld [vmem:[%s5 + $0x40] sm:$0xf]
        %v2308 = vld [vmem:[%s5 + $0x44] sm:$0xf]
        %v2309 = vld [vmem:[%s5 + $0x48] sm:$0xf]
        %v2310 = vld [vmem:[%s5 + $0x4c] sm:$0xf]
        %v2311 = vld [vmem:[%s5 + $0x50] sm:$0xf]
        %v2312 = vld [vmem:[%s5 + $0x54] sm:$0xf]
        %v2313 = vld [vmem:[%s5 + $0x58] sm:$0xf]
        %v2314 = vld [vmem:[%s5 + $0x5c] sm:$0xf]
        %v2315 = vld [vmem:[%s5 + $0x60] sm:$0xf]
        %v2316 = vld [vmem:[%s5 + $0x64] sm:$0xf]
        %v2317 = vld [vmem:[%s5 + $0x68] sm:$0xf]
        %v2318 = vld [vmem:[%s5 + $0x6c] sm:$0xf]
        %v2319 = vld [vmem:[%s5 + $0x70] sm:$0xf]
        %v2320 = vld [vmem:[%s5 + $0x74] sm:$0xf]
        %v2321 = vld [vmem:[%s5 + $0x78] sm:$0xf]
        %v2322 = vld [vmem:[%s5 + $0x7c] sm:$0xf]
        %s2323 = sld [smem:[#allocation2]]
        %v2324 = vstv %s2323
        %v2357 = vunpack.c.l.b16 %v2291
        %v2358 = vunpack.c.l.b16 %v2292
        %v2359 = vunpack.c.l.b16 %v2293
        %v2360 = vunpack.c.l.b16 %v2294
        %v2361 = vunpack.c.l.b16 %v2295
        %v2362 = vunpack.c.l.b16 %v2296
        %v2363 = vunpack.c.l.b16 %v2297
        %v2364 = vunpack.c.l.b16 %v2298
        %v2365 = vunpack.c.l.b16 %v2299
        %v2366 = vunpack.c.l.b16 %v2300
        %v2367 = vunpack.c.l.b16 %v2301
        %v2368 = vunpack.c.l.b16 %v2302
        %v2369 = vunpack.c.l.b16 %v2303
        %v2370 = vunpack.c.l.b16 %v2304
        %v2371 = vunpack.c.l.b16 %v2305
        %v2372 = vunpack.c.l.b16 %v2306
        %v2373 = vunpack.c.l.b16 %v2307
        %v2374 = vunpack.c.l.b16 %v2308
        %v2375 = vunpack.c.l.b16 %v2309
        %v2376 = vunpack.c.l.b16 %v2310
        %v2377 = vunpack.c.l.b16 %v2311
        %v2378 = vunpack.c.l.b16 %v2312
        %v2379 = vunpack.c.l.b16 %v2313
        %v2380 = vunpack.c.l.b16 %v2314
        %v2381 = vunpack.c.l.b16 %v2315
        %v2382 = vunpack.c.l.b16 %v2316
        %v2383 = vunpack.c.l.b16 %v2317
        %v2384 = vunpack.c.l.b16 %v2318
        %v2385 = vunpack.c.l.b16 %v2319
        %v2386 = vunpack.c.l.b16 %v2320
        %v2387 = vunpack.c.l.b16 %v2321
        %v2388 = vunpack.c.l.b16 %v2322
        %v2389 = vpack.c.b16 %v2358, %v2357
        %v2390 = vpack.c.b16 %v2360, %v2359
        %v2391 = vpack.c.b16 %v2362, %v2361
        %v2392 = vpack.c.b16 %v2364, %v2363
        %v2393 = vpack.c.b16 %v2366, %v2365
        %v2394 = vpack.c.b16 %v2368, %v2367
        %v2395 = vpack.c.b16 %v2370, %v2369
        %v2396 = vpack.c.b16 %v2372, %v2371
        %v2397 = vpack.c.b16 %v2374, %v2373
        %v2398 = vpack.c.b16 %v2376, %v2375
        %v2399 = vpack.c.b16 %v2378, %v2377
        %v2400 = vpack.c.b16 %v2380, %v2379
        %v2401 = vpack.c.b16 %v2382, %v2381
        %v2402 = vpack.c.b16 %v2384, %v2383
        %v2403 = vpack.c.b16 %v2386, %v2385
        %v2404 = vpack.c.b16 %v2388, %v2387
        %2421 = vmatprep.subr.bf16.mxu0 0
        %2422 = vmatpush1.bf16.msra.mxu0 %v2389
        %2423 = vmatprep.subr.bf16.mxu0 0
        %2424 = vmatpush1.bf16.msra.mxu0 %v2390
        %2425 = vmatprep.subr.bf16.mxu0 0
        %2426 = vmatpush1.bf16.msra.mxu0 %v2391
        %2427 = vmatprep.subr.bf16.mxu0 0
        %2428 = vmatpush1.bf16.msra.mxu0 %v2392
        %2429 = vmatprep.subr.bf16.mxu0 0
        %2430 = vmatpush1.bf16.msra.mxu0 %v2393
        %2431 = vmatprep.subr.bf16.mxu0 0
        %2432 = vmatpush1.bf16.msra.mxu0 %v2394
        %2433 = vmatprep.subr.bf16.mxu0 0
        %2434 = vmatpush1.bf16.msra.mxu0 %v2395
        %2435 = vmatprep.subr.bf16.mxu0 0
        %2436 = vmatpush1.bf16.msra.mxu0 %v2396
        %2437 = vmatprep.subr.bf16.mxu0 0
        %2438 = vmatpush1.bf16.msra.mxu0 %v2397
        %2439 = vmatprep.subr.bf16.mxu0 0
        %2440 = vmatpush1.bf16.msra.mxu0 %v2398
        %2441 = vmatprep.subr.bf16.mxu0 0
        %2442 = vmatpush1.bf16.msra.mxu0 %v2399
        %2443 = vmatprep.subr.bf16.mxu0 0
        %2444 = vmatpush1.bf16.msra.mxu0 %v2400
        %2445 = vmatprep.subr.bf16.mxu0 0
        %2446 = vmatpush1.bf16.msra.mxu0 %v2401
        %2447 = vmatprep.subr.bf16.mxu0 0
        %2448 = vmatpush1.bf16.msra.mxu0 %v2402
        %2449 = vmatprep.subr.bf16.mxu0 0
        %2450 = vmatpush1.bf16.msra.mxu0 %v2403
        %2451 = vmatprep.subr.bf16.mxu0 0
        %2452 = vmatpush1.bf16.msra.mxu0 %v2404
        %2453 = vmatprep.mubr.bf16.mxu0 %v2260
        %2454 = vmatmul.mubr.bf16.gmra.mrb[0].mxu0 %v2259
        %v2455 = vpop.f32.mrb[0].mxu0
        %v2456 = vadd.f32 %v2324, %v2455
        %v2457 = vpop.f32.mrb[0].mxu0
        %v2458 = vpop.f32.mrb[0].mxu0
        %v2459 = vadd.f32 %v2324, %v2458
        %v2460 = vpop.f32.mrb[0].mxu0
        %2461 = vmatprep.mubr.bf16.mxu0 %v2262
        %2462 = vmatmul.mubr.bf16.gmra.mrb[0].mxu0 %v2261
        %v2463 = vpop.f32.mrb[0].mxu0
        %v2464 = vadd.f32 %v2324, %v2463
        %v2465 = vpop.f32.mrb[0].mxu0
        %v2466 = vpop.f32.mrb[0].mxu0
        %v2467 = vadd.f32 %v2324, %v2466
        %v2468 = vpop.f32.mrb[0].mxu0
        %2469 = vmatprep.mubr.bf16.mxu0 %v2264
        %2470 = vmatmul.mubr.bf16.gmra.mrb[0].mxu0 %v2263
        %v2471 = vpop.f32.mrb[0].mxu0
        %v2472 = vadd.f32 %v2324, %v2471
        %v2473 = vpop.f32.mrb[0].mxu0
        %v2474 = vpop.f32.mrb[0].mxu0
        %v2475 = vadd.f32 %v2324, %v2474
        %v2476 = vpop.f32.mrb[0].mxu0
        %2477 = vmatprep.mubr.bf16.mxu0 %v2266
        %2478 = vmatmul.mubr.bf16.gmra.mrb[0].mxu0 %v2265
        %v2479 = vpop.f32.mrb[0].mxu0
        %v2480 = vadd.f32 %v2324, %v2479
        %v2481 = vpop.f32.mrb[0].mxu0
        %v2482 = vpop.f32.mrb[0].mxu0
        %v2483 = vadd.f32 %v2324, %v2482
        %v2484 = vpop.f32.mrb[0].mxu0
        %2485 = vmatprep.mubr.bf16.mxu0 %v2268
        %2486 = vmatmul.mubr.bf16.gmra.mrb[0].mxu0 %v2267
        %v2487 = vpop.f32.mrb[0].mxu0
        %v2488 = vadd.f32 %v2324, %v2487
        %v2489 = vpop.f32.mrb[0].mxu0
        %v2490 = vpop.f32.mrb[0].mxu0
        %v2491 = vadd.f32 %v2324, %v2490
        %v2492 = vpop.f32.mrb[0].mxu0
        %2493 = vmatprep.mubr.bf16.mxu0 %v2270
        %2494 = vmatmul.mubr.bf16.gmra.mrb[0].mxu0 %v2269
        %v2495 = vpop.f32.mrb[0].mxu0
        %v2496 = vadd.f32 %v2324, %v2495
        %v2497 = vpop.f32.mrb[0].mxu0
        %v2498 = vpop.f32.mrb[0].mxu0
        %v2499 = vadd.f32 %v2324, %v2498
        %v2500 = vpop.f32.mrb[0].mxu0
        %2501 = vmatprep.mubr.bf16.mxu0 %v2272
        %2502 = vmatmul.mubr.bf16.gmra.mrb[0].mxu0 %v2271
        %v2503 = vpop.f32.mrb[0].mxu0
        %v2504 = vadd.f32 %v2324, %v2503
        %v2505 = vpop.f32.mrb[0].mxu0
        %v2506 = vpop.f32.mrb[0].mxu0
        %v2507 = vadd.f32 %v2324, %v2506
        %v2508 = vpop.f32.mrb[0].mxu0
        %2509 = vmatprep.mubr.bf16.mxu0 %v2274
        %2510 = vmatmul.mubr.bf16.gmra.mrb[0].mxu0 %v2273
        %v2511 = vpop.f32.mrb[0].mxu0
        %v2512 = vadd.f32 %v2324, %v2511
        %v2513 = vpop.f32.mrb[0].mxu0
        %v2514 = vpop.f32.mrb[0].mxu0
        %v2515 = vadd.f32 %v2324, %v2514
        %v2516 = vpop.f32.mrb[0].mxu0
        %2517 = vmatprep.mubr.bf16.mxu0 %v2276
        %2518 = vmatmul.mubr.bf16.gmra.mrb[0].mxu0 %v2275
        %v2519 = vpop.f32.mrb[0].mxu0
        %v2520 = vadd.f32 %v2324, %v2519
        %v2521 = vpop.f32.mrb[0].mxu0
        %v2522 = vpop.f32.mrb[0].mxu0
        %v2523 = vadd.f32 %v2324, %v2522
        %v2524 = vpop.f32.mrb[0].mxu0
        %2525 = vmatprep.mubr.bf16.mxu0 %v2278
        %2526 = vmatmul.mubr.bf16.gmra.mrb[0].mxu0 %v2277
        %v2527 = vpop.f32.mrb[0].mxu0
        %v2528 = vadd.f32 %v2324, %v2527
        %v2529 = vpop.f32.mrb[0].mxu0
        %v2530 = vpop.f32.mrb[0].mxu0
        %v2531 = vadd.f32 %v2324, %v2530
        %v2532 = vpop.f32.mrb[0].mxu0
        %2533 = vmatprep.mubr.bf16.mxu0 %v2280
        %2534 = vmatmul.mubr.bf16.gmra.mrb[0].mxu0 %v2279
        %v2535 = vpop.f32.mrb[0].mxu0
        %v2536 = vadd.f32 %v2324, %v2535
        %v2537 = vpop.f32.mrb[0].mxu0
        %v2538 = vpop.f32.mrb[0].mxu0
        %v2539 = vadd.f32 %v2324, %v2538
        %v2540 = vpop.f32.mrb[0].mxu0
        %2541 = vmatprep.mubr.bf16.mxu0 %v2282
        %2542 = vmatmul.mubr.bf16.gmra.mrb[0].mxu0 %v2281
        %v2543 = vpop.f32.mrb[0].mxu0
        %v2544 = vadd.f32 %v2324, %v2543
        %v2545 = vpop.f32.mrb[0].mxu0
        %v2546 = vpop.f32.mrb[0].mxu0
        %v2547 = vadd.f32 %v2324, %v2546
        %v2548 = vpop.f32.mrb[0].mxu0
        %2549 = vmatprep.mubr.bf16.mxu0 %v2284
        %2550 = vmatmul.mubr.bf16.gmra.mrb[0].mxu0 %v2283
        %v2551 = vpop.f32.mrb[0].mxu0
        %v2552 = vadd.f32 %v2324, %v2551
        %v2553 = vpop.f32.mrb[0].mxu0
        %v2554 = vpop.f32.mrb[0].mxu0
        %v2555 = vadd.f32 %v2324, %v2554
        %v2556 = vpop.f32.mrb[0].mxu0
        %2557 = vmatprep.mubr.bf16.mxu0 %v2286
        %2558 = vmatmul.mubr.bf16.gmra.mrb[0].mxu0 %v2285
        %v2559 = vpop.f32.mrb[0].mxu0
        %v2560 = vadd.f32 %v2324, %v2559
        %v2561 = vpop.f32.mrb[0].mxu0
        %v2562 = vpop.f32.mrb[0].mxu0
        %v2563 = vadd.f32 %v2324, %v2562
        %v2564 = vpop.f32.mrb[0].mxu0
        %2565 = vmatprep.mubr.bf16.mxu0 %v2288
        %2566 = vmatmul.mubr.bf16.gmra.mrb[0].mxu0 %v2287
        %v2567 = vpop.f32.mrb[0].mxu0
        %v2568 = vadd.f32 %v2324, %v2567
        %v2569 = vpop.f32.mrb[0].mxu0
        %v2570 = vpop.f32.mrb[0].mxu0
        %v2571 = vadd.f32 %v2324, %v2570
        %v2572 = vpop.f32.mrb[0].mxu0
        %2573 = vmatprep.mubr.bf16.mxu0 %v2290
        %2574 = vmatmul.mubr.bf16.gmra.mrb[0].mxu0 %v2289
        %v2575 = vpop.f32.mrb[0].mxu0
        %v2576 = vadd.f32 %v2324, %v2575
        %v2577 = vpop.f32.mrb[0].mxu0
        %v2578 = vpop.f32.mrb[0].mxu0
        %v2579 = vadd.f32 %v2324, %v2578
        %v2580 = vpop.f32.mrb[0].mxu0
        %2581 = vdwg.mxu0
        %v2582 = vxor.u32 %v2456, 2147483648
        %v2583 = vxor.u32 %v2459, 2147483648
        %v2584 = vxor.u32 %v2464, 2147483648
        %v2585 = vxor.u32 %v2467, 2147483648
        %v2586 = vxor.u32 %v2472, 2147483648
        %v2587 = vxor.u32 %v2475, 2147483648
        %v2588 = vxor.u32 %v2480, 2147483648
        %v2589 = vxor.u32 %v2483, 2147483648
        %v2590 = vxor.u32 %v2488, 2147483648
        %v2591 = vxor.u32 %v2491, 2147483648
        %v2592 = vxor.u32 %v2496, 2147483648
        %v2593 = vxor.u32 %v2499, 2147483648
        %v2594 = vxor.u32 %v2504, 2147483648
        %v2595 = vxor.u32 %v2507, 2147483648
        %v2596 = vxor.u32 %v2512, 2147483648
        %v2597 = vxor.u32 %v2515, 2147483648
        %v2598 = vxor.u32 %v2520, 2147483648
        %v2599 = vxor.u32 %v2523, 2147483648
        %v2600 = vxor.u32 %v2528, 2147483648
        %v2601 = vxor.u32 %v2531, 2147483648
        %v2602 = vxor.u32 %v2536, 2147483648
        %v2603 = vxor.u32 %v2539, 2147483648
        %v2604 = vxor.u32 %v2544, 2147483648
        %v2605 = vxor.u32 %v2547, 2147483648
        %v2606 = vxor.u32 %v2552, 2147483648
        %v2607 = vxor.u32 %v2555, 2147483648
        %v2608 = vxor.u32 %v2560, 2147483648
        %v2609 = vxor.u32 %v2563, 2147483648
        %v2610 = vxor.u32 %v2568, 2147483648
        %v2611 = vxor.u32 %v2571, 2147483648
        %v2612 = vxor.u32 %v2576, 2147483648
        %v2613 = vxor.u32 %v2579, 2147483648
        %v2614 = vmul.f32 %v2582, 1.442695
        %v2615 = vpow.pop %v2614
        %v2616 = vmul.f32 %v2583, 1.442695
        %v2617 = vpow.pop %v2616
        %v2618 = vmul.f32 %v2584, 1.442695
        %v2619 = vpow.pop %v2618
        %v2620 = vmul.f32 %v2585, 1.442695
        %v2621 = vpow.pop %v2620
        %v2622 = vmul.f32 %v2586, 1.442695
        %v2623 = vpow.pop %v2622
        %v2624 = vmul.f32 %v2587, 1.442695
        %v2625 = vpow.pop %v2624
        %v2626 = vmul.f32 %v2588, 1.442695
        %v2627 = vpow.pop %v2626
        %v2628 = vmul.f32 %v2589, 1.442695
        %v2629 = vpow.pop %v2628
        %v2630 = vmul.f32 %v2590, 1.442695
        %v2631 = vpow.pop %v2630
        %v2632 = vmul.f32 %v2591, 1.442695
        %v2633 = vpow.pop %v2632
        %v2634 = vmul.f32 %v2592, 1.442695
        %v2635 = vpow.pop %v2634
        %v2636 = vmul.f32 %v2593, 1.442695
        %v2637 = vpow.pop %v2636
        %v2638 = vmul.f32 %v2594, 1.442695
        %v2639 = vpow.pop %v2638
        %v2640 = vmul.f32 %v2595, 1.442695
        %v2641 = vpow.pop %v2640
        %v2642 = vmul.f32 %v2596, 1.442695
        %v2643 = vpow.pop %v2642
        %v2644 = vmul.f32 %v2597, 1.442695
        %v2645 = vpow.pop %v2644
        %v2646 = vmul.f32 %v2598, 1.442695
        %v2647 = vpow.pop %v2646
        %v2648 = vmul.f32 %v2599, 1.442695
        %v2649 = vpow.pop %v2648
        %v2650 = vmul.f32 %v2600, 1.442695
        %v2651 = vpow.pop %v2650
        %v2652 = vmul.f32 %v2601, 1.442695
        %v2653 = vpow.pop %v2652
        %v2654 = vmul.f32 %v2602, 1.442695
        %v2655 = vpow.pop %v2654
        %v2656 = vmul.f32 %v2603, 1.442695
        %v2657 = vpow.pop %v2656
        %v2658 = vmul.f32 %v2604, 1.442695
        %v2659 = vpow.pop %v2658
        %v2660 = vmul.f32 %v2605, 1.442695
        %v2661 = vpow.pop %v2660
        %v2662 = vmul.f32 %v2606, 1.442695
        %v2663 = vpow.pop %v2662
        %v2664 = vmul.f32 %v2607, 1.442695
        %v2665 = vpow.pop %v2664
        %v2666 = vmul.f32 %v2608, 1.442695
        %v2667 = vpow.pop %v2666
        %v2668 = vmul.f32 %v2609, 1.442695
        %v2669 = vpow.pop %v2668
        %v2670 = vmul.f32 %v2610, 1.442695
        %v2671 = vpow.pop %v2670
        %v2672 = vmul.f32 %v2611, 1.442695
        %v2673 = vpow.pop %v2672
        %v2674 = vmul.f32 %v2612, 1.442695
        %v2675 = vpow.pop %v2674
        %v2676 = vmul.f32 %v2613, 1.442695
        %v2677 = vpow.pop %v2676
        %v2678 = vadd.f32 %v2615, 1.0
        %v2679 = vadd.f32 %v2617, 1.0
        %v2680 = vadd.f32 %v2619, 1.0
        %v2681 = vadd.f32 %v2621, 1.0
        %v2682 = vadd.f32 %v2623, 1.0
        %v2683 = vadd.f32 %v2625, 1.0
        %v2684 = vadd.f32 %v2627, 1.0
        %v2685 = vadd.f32 %v2629, 1.0
        %v2686 = vadd.f32 %v2631, 1.0
        %v2687 = vadd.f32 %v2633, 1.0
        %v2688 = vadd.f32 %v2635, 1.0
        %v2689 = vadd.f32 %v2637, 1.0
        %v2690 = vadd.f32 %v2639, 1.0
        %v2691 = vadd.f32 %v2641, 1.0
        %v2692 = vadd.f32 %v2643, 1.0
        %v2693 = vadd.f32 %v2645, 1.0
        %v2694 = vadd.f32 %v2647, 1.0
        %v2695 = vadd.f32 %v2649, 1.0
        %v2696 = vadd.f32 %v2651, 1.0
        %v2697 = vadd.f32 %v2653, 1.0
        %v2698 = vadd.f32 %v2655, 1.0
        %v2699 = vadd.f32 %v2657, 1.0
        %v2700 = vadd.f32 %v2659, 1.0
        %v2701 = vadd.f32 %v2661, 1.0
        %v2702 = vadd.f32 %v2663, 1.0
        %v2703 = vadd.f32 %v2665, 1.0
        %v2704 = vadd.f32 %v2667, 1.0
        %v2705 = vadd.f32 %v2669, 1.0
        %v2706 = vadd.f32 %v2671, 1.0
        %v2707 = vadd.f32 %v2673, 1.0
        %v2708 = vadd.f32 %v2675, 1.0
        %v2709 = vadd.f32 %v2677, 1.0
        %v2710 = vrcp.pop %v2678
        %v2711 = vmul.f32 1.0, %v2710
        %v2712 = vrcp.pop %v2679
        %v2713 = vmul.f32 1.0, %v2712
        %v2714 = vrcp.pop %v2680
        %v2715 = vmul.f32 1.0, %v2714
        %v2716 = vrcp.pop %v2681
        %v2717 = vmul.f32 1.0, %v2716
        %v2718 = vrcp.pop %v2682
        %v2719 = vmul.f32 1.0, %v2718
        %v2720 = vrcp.pop %v2683
        %v2721 = vmul.f32 1.0, %v2720
        %v2722 = vrcp.pop %v2684
        %v2723 = vmul.f32 1.0, %v2722
        %v2724 = vrcp.pop %v2685
        %v2725 = vmul.f32 1.0, %v2724
        %v2726 = vrcp.pop %v2686
        %v2727 = vmul.f32 1.0, %v2726
        %v2728 = vrcp.pop %v2687
        %v2729 = vmul.f32 1.0, %v2728
        %v2730 = vrcp.pop %v2688
        %v2731 = vmul.f32 1.0, %v2730
        %v2732 = vrcp.pop %v2689
        %v2733 = vmul.f32 1.0, %v2732
        %v2734 = vrcp.pop %v2690
        %v2735 = vmul.f32 1.0, %v2734
        %v2736 = vrcp.pop %v2691
        %v2737 = vmul.f32 1.0, %v2736
        %v2738 = vrcp.pop %v2692
        %v2739 = vmul.f32 1.0, %v2738
        %v2740 = vrcp.pop %v2693
        %v2741 = vmul.f32 1.0, %v2740
        %v2742 = vrcp.pop %v2694
        %v2743 = vmul.f32 1.0, %v2742
        %v2744 = vrcp.pop %v2695
        %v2745 = vmul.f32 1.0, %v2744
        %v2746 = vrcp.pop %v2696
        %v2747 = vmul.f32 1.0, %v2746
        %v2748 = vrcp.pop %v2697
        %v2749 = vmul.f32 1.0, %v2748
        %v2750 = vrcp.pop %v2698
        %v2751 = vmul.f32 1.0, %v2750
        %v2752 = vrcp.pop %v2699
        %v2753 = vmul.f32 1.0, %v2752
        %v2754 = vrcp.pop %v2700
        %v2755 = vmul.f32 1.0, %v2754
        %v2756 = vrcp.pop %v2701
        %v2757 = vmul.f32 1.0, %v2756
        %v2758 = vrcp.pop %v2702
        %v2759 = vmul.f32 1.0, %v2758
        %v2760 = vrcp.pop %v2703
        %v2761 = vmul.f32 1.0, %v2760
        %v2762 = vrcp.pop %v2704
        %v2763 = vmul.f32 1.0, %v2762
        %v2764 = vrcp.pop %v2705
        %v2765 = vmul.f32 1.0, %v2764
        %v2766 = vrcp.pop %v2706
        %v2767 = vmul.f32 1.0, %v2766
        %v2768 = vrcp.pop %v2707
        %v2769 = vmul.f32 1.0, %v2768
        %v2770 = vrcp.pop %v2708
        %v2771 = vmul.f32 1.0, %v2770
        %v2772 = vrcp.pop %v2709
        %v2773 = vmul.f32 1.0, %v2772
        %vm2774 = vcmask 7168
        %2775 = vst.msk [vmem:[%s330] sm:$0xff] %vm2774, %v2711
        %2776 = vst.msk [vmem:[%s330 + $0x8] sm:$0xff] %vm2774, %v2713
        %2777 = vst.msk [vmem:[%s330 + $0x10] sm:$0xff] %vm2774, %v2715
        %2778 = vst.msk [vmem:[%s330 + $0x18] sm:$0xff] %vm2774, %v2717
        %2779 = vst.msk [vmem:[%s330 + $0x20] sm:$0xff] %vm2774, %v2719
        %2780 = vst.msk [vmem:[%s330 + $0x28] sm:$0xff] %vm2774, %v2721
        %2781 = vst.msk [vmem:[%s330 + $0x30] sm:$0xff] %vm2774, %v2723
        %2782 = vst.msk [vmem:[%s330 + $0x38] sm:$0xff] %vm2774, %v2725
        %2783 = vst.msk [vmem:[%s330 + $0x40] sm:$0xff] %vm2774, %v2727
        %2784 = vst.msk [vmem:[%s330 + $0x48] sm:$0xff] %vm2774, %v2729
        %2785 = vst.msk [vmem:[%s330 + $0x50] sm:$0xff] %vm2774, %v2731
        %2786 = vst.msk [vmem:[%s330 + $0x58] sm:$0xff] %vm2774, %v2733
        %2787 = vst.msk [vmem:[%s330 + $0x60] sm:$0xff] %vm2774, %v2735
        %2788 = vst.msk [vmem:[%s330 + $0x68] sm:$0xff] %vm2774, %v2737
        %2789 = vst.msk [vmem:[%s330 + $0x70] sm:$0xff] %vm2774, %v2739
        %2790 = vst.msk [vmem:[%s330 + $0x78] sm:$0xff] %vm2774, %v2741
        %2791 = vst.msk [vmem:[%s330 + $0x80] sm:$0xff] %vm2774, %v2743
        %2792 = vst.msk [vmem:[%s330 + $0x88] sm:$0xff] %vm2774, %v2745
        %2793 = vst.msk [vmem:[%s330 + $0x90] sm:$0xff] %vm2774, %v2747
        %2794 = vst.msk [vmem:[%s330 + $0x98] sm:$0xff] %vm2774, %v2749
        %2795 = vst.msk [vmem:[%s330 + $0xa0] sm:$0xff] %vm2774, %v2751
        %2796 = vst.msk [vmem:[%s330 + $0xa8] sm:$0xff] %vm2774, %v2753
        %2797 = vst.msk [vmem:[%s330 + $0xb0] sm:$0xff] %vm2774, %v2755
        %2798 = vst.msk [vmem:[%s330 + $0xb8] sm:$0xff] %vm2774, %v2757
        %2799 = vst.msk [vmem:[%s330 + $0xc0] sm:$0xff] %vm2774, %v2759
        %2800 = vst.msk [vmem:[%s330 + $0xc8] sm:$0xff] %vm2774, %v2761
        %2801 = vst.msk [vmem:[%s330 + $0xd0] sm:$0xff] %vm2774, %v2763
        %2802 = vst.msk [vmem:[%s330 + $0xd8] sm:$0xff] %vm2774, %v2765
        %2803 = vst.msk [vmem:[%s330 + $0xe0] sm:$0xff] %vm2774, %v2767
        %2804 = vst.msk [vmem:[%s330 + $0xe8] sm:$0xff] %vm2774, %v2769
        %2805 = vst.msk [vmem:[%s330 + $0xf0] sm:$0xff] %vm2774, %v2771
        %2806 = vst.msk [vmem:[%s330 + $0xf8] sm:$0xff] %vm2774, %v2773
        %s2807 = smul.u32 32, %s23
        %p2808 = scmp.lt.s32.totalorder %s2807, 63
        %s2809 = scalar_select %p2808, %s2807, 63
        %s2810 = smul.addr %s2809, 8
        %s2811 = scalar_lea.vmem %s7, %s2810
        // Predicated region
        $region61: #{tpu_custom_call.1} parent=47 // pred_check
          %p2812 = pneg %p193
        $region62: #{tpu_custom_call.1} parent=47 // pred_check_branch
          %2814 = sbr.rel (%p2812) target = $region64
        $region63: #{tpu_custom_call.1} parent=47 // pred_region
          %s2815 = smul.u32 32, %s23
        $region64: #{tpu_custom_call.1} parent=47 // pred_fallthru
          _
      $region48: #{tpu_custom_call.1} parent=5 // pred_fallthru
        _
      %p2816 = scmp.le.s32.totalorder 2, %s18
      // Predicated region
      $region65: #{tpu_custom_call.1} parent=5 // pred_check
        %p2817 = pneg %p2816
      $region66: #{tpu_custom_call.1} parent=5 // pred_check_branch
        %2819 = sbr.rel (%p2817) target = $region68
      $region67: #{tpu_custom_call.1} parent=5 // pred_region
        %s2820 = ssub.s32 %s18, 2
        // Predicated region
        $region69: #{tpu_custom_call.1} parent=67 // pred_check
          %p2821 = pneg %p199
        $region70: #{tpu_custom_call.1} parent=67 // pred_check_branch
          %2823 = sbr.rel (%p2821) target = $region72
        $region71: #{tpu_custom_call.1} parent=67 // pred_region
          %s2824 = smul.u32 32, %s24
          %p2825 = scmp.lt.s32.totalorder %s2824, 63
          %s2826 = scalar_select %p2825, %s2824, 63
          %s2827 = smul.addr %s2826, 8
          %s2828 = scalar_lea.vmem %s7, %s2827
        $region72: #{tpu_custom_call.1} parent=67 // pred_fallthru
          _
      $region68: #{tpu_custom_call.1} parent=5 // pred_fallthru
        _
    $region6: #{tpu_custom_call.1} parent=1 // loop_footer
      %s22 = sadd.s32 1, %s18
    $region7: #{tpu_custom_call.1} parent=1 // loop_footer_branch
      %17 = sbr.rel target = $region3
    $region8: #{tpu_custom_call.1} parent=1 // loop_exit
      _
    %2829 = vsyncpa [#allocation4], 1
    %s2830 = scalar_lea.sflag [#allocation4], 1
    %2831 = vsyncpa %s2830, 1
    %2832 = vsyncpa [#allocation6], 1

</llo_original>
